<compile_context>
chip_gen: v7x
topology: tpu7x:2x2x1
jax: 0.10.0
libtpu: 0.0.40
codegen_flags: <defaults>
</compile_context>

<pallas_src>
import jax
import jax.numpy as jnp
from jax import lax
from jax.experimental import pallas as pl
from jax.experimental.pallas import tpu as pltpu

EPS = 1e-5  # nn.BatchNorm2d default


# ---------------------------------------------------------------------------
# kernels
# ---------------------------------------------------------------------------
def _conv_stats_kernel(xm_ref, xh_ref, w_ref, y_ref, sum_ref, ssq_ref):
    """Pass 1: stride-2 transposed conv as ONE phase-blocked MXU matmul per row-slab,
    plus per-tile BatchNorm partial sums.

    xm_ref  : (1, th, W+1, Cin)   bf16  padded-NHWC row slab, rows [h0, h0+th)
    xh_ref  : (1, 1,  W+1, Cin)   bf16  halo row h0+th (bottom zero-pad row for the last tile)
    w_ref   : (4*Cin, 4*Cout)     bf16  phase-blocked weight
    y_ref   : (1, th, W, 4*Cout)  bf16  unnormalized conv output (consumed by pass 2)
    sum_ref : (1, 1, 1, 4*Cout)   f32   sum over tile rows of y
    ssq_ref : (1, 1, 1, 4*Cout)   f32   sum over tile rows of y*y
    """
    th, wp1, cin = xm_ref.shape[1], xm_ref.shape[2], xm_ref.shape[3]
    w_img = wp1 - 1

    # Upcast the tiny slab to f32 so all slicing/concat relayouts run on the native (8,128)
    # layout; HBM traffic stays bf16.  bf16 -> f32 -> bf16 round-trips exactly.
    xm = xm_ref[0].astype(jnp.float32)            # rows h0 .. h0+th-1       (dr = 0)
    xh = xh_ref[0].astype(jnp.float32)            # row  h0+th               (halo)
    if th > 1:
        xdr1 = jnp.concatenate([xm[1:], xh], axis=0)   # rows h0+1 .. h0+th  (dr = 1)
    else:
        xdr1 = xh

    # 4 shifted views, channel-concatenated -> (th*W, 4*Cin) im2col slab in VMEM.
    # View order (dr, dc) = (0,0), (0,1), (1,0), (1,1) matches the row-block order of w_ref.
    views = (xm[:, 0:w_img, :], xm[:, 1:wp1, :],
             xdr1[:, 0:w_img, :], xdr1[:, 1:wp1, :])
    xcat = jnp.concatenate(views, axis=-1).reshape(th * w_img, 4 * cin)   # f32
    x2 = xcat.astype(w_ref.dtype)                                         # bf16 MXU operand

    y = jnp.dot(x2, w_ref[...], preferred_element_type=jnp.float32)      # (th*W, 4*Cout)

    # sum(y) analytically: sum_rows(y) == sum_rows(x2) @ W  -> no cross-sublane reduction of
    # the wide y tile; only the y*y reduction stays on the VPU/XLU.
    rsum = jnp.sum(xcat, axis=0, keepdims=True)                           # (1, 4*Cin) f32
    sum_ref[...] = jnp.dot(rsum, w_ref[...].astype(jnp.float32),
                           preferred_element_type=jnp.float32)[None, None]
    ssq_ref[...] = jnp.sum(y * y, axis=0, keepdims=True)[None, None]

    y_ref[...] = y.reshape(1, th, w_img, -1).astype(y_ref.dtype)


def _bn_relu_kernel(y_ref, scale_ref, shift_ref, o_ref):
    """Pass 2: pure elementwise folded BatchNorm + ReLU over the stored conv output.

    y_ref     : (1, th, W, 4*Cout) bf16   unnormalized conv output tile
    scale_ref : (1, 4*Cout)        f32    gamma * rsqrt(var+eps)   (per phase-column)
    shift_ref : (1, 4*Cout)        f32    beta - mean * scale
    o_ref     : (1, th, W, 4*Cout) bf16   aliased in place over y's buffer
    """
    y = y_ref[...].astype(jnp.float32)
    o_ref[...] = jnp.maximum(y * scale_ref[...] + shift_ref[...], 0.0).astype(o_ref.dtype)


# ---------------------------------------------------------------------------
# wrapper
# ---------------------------------------------------------------------------
def _vmem_budget_bytes():
    # ~60% of per-core VMEM (64 MiB on v7x, 128 MiB on v5e/v6e); the rest is left for Mosaic
    # internal scratch / relayout copies.
    try:
        cap = int(pltpu.get_tpu_info().vmem_capacity_bytes)
    except Exception:
        cap = 64 << 20          # conservative default = v7x capacity
    return min(cap * 3 // 5, 96 << 20)


def _pick_tile_h(H, W, Cin, Cout):
    """Rows-per-tile from a bytes-per-row VMEM model (not a row-count heuristic)."""
    c4i, c4o = 4 * Cin, 4 * Cout
    budget = _vmem_budget_bytes()
    per_row = ((W + 1) * Cin * (2 * 2 + 3 * 4)   # x slab: 2 bf16 pipeline bufs + f32 copies
               + W * c4i * (4 + 2)               # f32 im2col slab + bf16 MXU operand
               + W * c4o * (4 + 2 * 2))          # f32 matmul result + 2 bf16 y out buffers
    fixed = (2 * c4i * c4o * 2                   # phase-blocked weight (double-buffered)
             + 2 * (W + 1) * Cin * 2             # halo row (double-buffered)
             + (4 << 20))                        # headroom for Mosaic internal scratch
    th = max(1, (budget - fixed) // per_row)
    th = min(th, H, max(1, 8192 // max(W, 1)))   # keep several grid steps for pipelining
    nh = -(-H // th)
    if nh == 1 and H >= 2:                       # >= 2 row tiles so both v7x TCs get work
        nh = 2
        th = -(-H // nh)
    return int(th), int(nh)


def deconv2d_forward(x_nchw, w_t, bias, gamma, beta,
                     *, stride=2, padding=1, output_padding=1, dilation=1,
                     matmul_dtype=jnp.bfloat16):
    """DeConv2D forward.  x_nchw: (N, Cin, H, W);  w_t: (Cin, Cout, 3, 3) (PyTorch layout)."""
    N, Cin, H, W = x_nchw.shape
    Cin_w, Cout, KH, KW = w_t.shape
    assert Cin == Cin_w
    # TODO(synk): the 4-phase decomposition is specialised to the module defaults
    #             (k=3, stride=2, padding=1, output_padding=1, dilation=1).
    assert (KH, KW) == (3, 3) and stride == 2 and padding == 1 \
        and output_padding == 1 and dilation == 1
    del bias  # exact no-op under train-mode BatchNorm (cancels in y - mean(y))

    Ho, Wo = 2 * H, 2 * W
    C4i, C4o = 4 * Cin, 4 * Cout

    th, nh = _pick_tile_h(H, W, Cin, Cout)
    Hpad = th * nh

    # ---- padded NHWC input (1 bottom row + 1 right column of zeros).  This is the ONLY
    #      activation copy; the 4 shifted im2col views are assembled inside the kernel. ----
    x = jnp.transpose(x_nchw, (0, 2, 3, 1))                    # NHWC, channels on lanes
    xp = jnp.pad(x, ((0, 0), (0, Hpad + 1 - H), (0, 1), (0, 0))).astype(matmul_dtype)

    # ---- phase-blocked weight: one (4*Cin, 4*Cout) matmul computes all 4 output parities.
    #      4*Cin <= 256 here, so the 7/16 zero blocks ride inside one MXU contraction for free.
    # TODO(synk): for 4*Cin > 256, split into per-phase matmuls with exact contraction widths
    #             (Cin / 2Cin / 2Cin / 4Cin) to drop the 1.78x zero-block MXU work.
    wk = lambda ky, kx: w_t[:, :, ky, kx]                      # (Cin, Cout) tap matrix
    z = jnp.zeros((Cin, Cout), w_t.dtype)
    #                        rows:  [ v00      , v01      , v10      , v11      ]
    col_ee = jnp.concatenate([wk(1, 1), z,         z,         z        ], axis=0)
    col_eo = jnp.concatenate([wk(1, 2), wk(1, 0),  z,         z        ], axis=0)
    col_oe = jnp.concatenate([wk(2, 1), z,         wk(0, 1),  z        ], axis=0)
    col_oo = jnp.concatenate([wk(2, 2), wk(2, 0),  wk(0, 2),  wk(0, 0) ], axis=0)
    w_big = jnp.concatenate([col_ee, col_eo, col_oe, col_oo], axis=1).astype(matmul_dtype)

    vmem_limit = int(_vmem_budget_bytes())
    cparams = pltpu.CompilerParams(
        dimension_semantics=("parallel", "parallel"),   # independent tiles; v7x megacore
        vmem_limit_bytes=vmem_limit)

    # Main row slab [h0, h0+th) and its 1-row halo at h0+th (H block size 1 => the "+1"
    # element offset is a legal block index).  Both specs read the SAME padded array.
    xm_spec = pl.BlockSpec((1, th, W + 1, Cin), lambda n, i: (n, i, 0, 0))
    xh_spec = pl.BlockSpec((1, 1, W + 1, Cin), lambda n, i: (n, (i + 1) * th, 0, 0))
    # Constant across the grid.  TODO(synk): pipeline_mode=pl.Buffered(1) (or a one-shot DMA
    # into scratch) would reclaim the second weight buffer on VMEM-tight v7x shapes.
    w_spec = pl.BlockSpec((C4i, C4o), lambda n, i: (0, 0))
    y_spec = pl.BlockSpec((1, th, W, C4o), lambda n, i: (n, i, 0, 0))
    part_spec = pl.BlockSpec((1, 1, 1, C4o), lambda n, i: (n, i, 0, 0))

    # ---- pass 1: conv matmul -> bf16 y + per-tile BN partial sums ----
    y, sums, ssqs = pl.pallas_call(
        _conv_stats_kernel,
        out_shape=(jax.ShapeDtypeStruct((N, Hpad, W, C4o), matmul_dtype),
                   jax.ShapeDtypeStruct((N, nh, 1, C4o), jnp.float32),
                   jax.ShapeDtypeStruct((N, nh, 1, C4o), jnp.float32)),
        grid_spec=pltpu.PrefetchScalarGridSpec(
            num_scalar_prefetch=0, grid=(N, nh),
            in_specs=[xm_spec, xh_spec, w_spec],
            out_specs=[y_spec, part_spec, part_spec]),
        compiler_params=cparams,
    )(xp, xp, w_big)

    # ---- tiny finalize: exact GLOBAL batch statistics folded into per-channel scale/shift
    #      (zero-padded rows contribute 0 to both partials; count uses the true N*Ho*Wo) ----
    count = jnp.float32(N * Ho * Wo)
    ch_sum = jnp.sum(sums.reshape(-1, 4, Cout), axis=(0, 1))
    ch_ssq = jnp.sum(ssqs.reshape(-1, 4, Cout), axis=(0, 1))
    mean = ch_sum / count
    # TODO(synk): E[y^2]-E[y]^2 in f32 can lose precision if the conv-output mean is large;
    #             a Chan-style centered merge of the per-tile partials would be more robust.
    var = jnp.maximum(ch_ssq / count - mean * mean, 0.0)       # biased variance (BN train mode)
    scale = gamma.astype(jnp.float32) * lax.rsqrt(var + EPS)
    shift = beta.astype(jnp.float32) - mean * scale
    scale4 = jnp.tile(scale, 4).reshape(1, C4o)                # columns ordered (phase, Cout)
    shift4 = jnp.tile(shift, 4).reshape(1, C4o)

    # ---- pass 2: elementwise BN apply + ReLU over the stored y (no conv recompute),
    #      bf16 output written in place over the y buffer ----
    sc_spec = pl.BlockSpec((1, C4o), lambda n, i: (0, 0))
    y_bn = pl.pallas_call(
        _bn_relu_kernel,
        out_shape=jax.ShapeDtypeStruct((N, Hpad, W, C4o), matmul_dtype),
        grid_spec=pltpu.PrefetchScalarGridSpec(
            num_scalar_prefetch=0, grid=(N, nh),
            in_specs=[y_spec, sc_spec, sc_spec],
            out_specs=y_spec),
        input_output_aliases={0: 0},
        compiler_params=cparams,
    )(y, scale4, shift4)

    # ---- layout plumbing back to PyTorch NCHW (one fused XLA transpose + f32 cast).
    # TODO(synk): emitting NCHW (or channels-last, if the consumer allowed it) directly from
    #             the apply kernel would remove this extra read+write of the output.
    # NOTE: for Cout >= 32 the kernel's last dim (4*Cout) is already a multiple of 128, so
    #       stores are lane-dense; only smaller Cout would want channel padding.
    out = y_bn[:, :H].reshape(N, H, W, 2, 2, Cout)     # (n, r, c, pr, pc, co)
    out = jnp.transpose(out, (0, 5, 1, 3, 2, 4))       # (n, co, r, pr, c, pc)
    return out.reshape(N, Cout, Ho, Wo).astype(jnp.float32)


# ---------------------------------------------------------------------------
# pure-JAX reference (ConvTranspose2d + train-mode BN + ReLU) for sanity check
# ---------------------------------------------------------------------------
def _reference_forward(x_nchw, w_t, bias, gamma, beta,
                       *, stride=2, padding=1, output_padding=1, dilation=1):
    K = w_t.shape[-1]
    w_conv = jnp.transpose(w_t[:, :, ::-1, ::-1], (1, 0, 2, 3))  # (Cout, Cin, K, K)
    lo = dilation * (K - 1) - padding
    y = lax.conv_general_dilated(
        x_nchw.astype(jnp.float32), w_conv.astype(jnp.float32),
        window_strides=(1, 1),
        padding=[(lo, lo + output_padding), (lo, lo + output_padding)],
        lhs_dilation=(stride, stride), rhs_dilation=(dilation, dilation),
        dimension_numbers=("NCHW", "OIHW", "NCHW"),
    ) + bias.reshape(1, -1, 1, 1)
    mean = jnp.mean(y, axis=(0, 2, 3), keepdims=True)
    var = jnp.mean((y - mean) ** 2, axis=(0, 2, 3), keepdims=True)
    y = (y - mean) * lax.rsqrt(var + EPS) * gamma.reshape(1, -1, 1, 1) + beta.reshape(1, -1, 1, 1)
    return jnp.maximum(y, 0.0)


if __name__ == "__main__":
    N, Cin, Cout, H, W = 2, 4, 8, 16, 16
    K = 3

    key = jax.random.PRNGKey(0)
    kx, kw, kb, kg, kbt = jax.random.split(key, 5)

    x = jax.random.normal(kx, (N, Cin, H, W), dtype=jnp.float32)
    w_t = jax.random.normal(kw, (Cin, Cout, K, K), dtype=jnp.float32) * 0.1  # (in, out, kH, kW)
    bias = jax.random.normal(kb, (Cout,), dtype=jnp.float32) * 0.1
    gamma = 1.0 + 0.1 * jax.random.normal(kg, (Cout,), dtype=jnp.float32)
    beta = 0.1 * jax.random.normal(kbt, (Cout,), dtype=jnp.float32)

    fwd = jax.jit(deconv2d_forward)
    out = jax.block_until_ready(fwd(x, w_t, bias, gamma, beta))
    assert out.shape == (N, Cout, 2 * H, 2 * W), out.shape

    ref = jax.block_until_ready(_reference_forward(x, w_t, bias, gamma, beta))
    # bf16 matmul operands + bf16 staging of y and of the output (f32 math throughout) on a
    # unit-scale BatchNorm-normalized result -> worst-case abs error a few 1e-2.
    err = float(jnp.max(jnp.abs(out - ref)))
    assert err < 7.5e-2, err

    print("KERNEL_OK")
</pallas_src>

<mosaic_0001>
module attributes {stable_mosaic.version = 11 : i64} {
  func.func @_conv_stats_kernel(%arg0: i32, %arg1: i32, %arg2: memref<1x8x17x4xbf16, #tpu.memory_space<vmem>>, %arg3: memref<1x1x17x4xbf16, #tpu.memory_space<vmem>>, %arg4: memref<16x32xbf16, #tpu.memory_space<vmem>>, %arg5: memref<1x8x16x32xbf16, #tpu.memory_space<vmem>>, %arg6: memref<1x1x1x32xf32, #tpu.memory_space<vmem>>, %arg7: memref<1x1x1x32xf32, #tpu.memory_space<vmem>>) attributes {dimension_semantics = [#tpu.dimension_semantics<parallel>, #tpu.dimension_semantics<parallel>], iteration_bounds = array<i64: 2, 2>, scalar_prefetch = 0 : i64, scratch_operands = 0 : i64, tpu.core_type = #tpu.core_type<tc>, window_params = [{transform_indices = @transform_0, window_bounds = array<i64: 1, 8, 17, 4>}, {transform_indices = @transform_1, window_bounds = array<i64: 1, 1, 17, 4>}, {pipeline_mode = #tpu.pipeline_mode<synchronous>, transform_indices = @transform_2, window_bounds = array<i64: 16, 32>}, {transform_indices = @transform_3, window_bounds = array<i64: 1, 8, 16, 32>}, {transform_indices = @transform_4, window_bounds = array<i64: 1, 1, 1, 32>}, {transform_indices = @transform_5, window_bounds = array<i64: 1, 1, 1, 32>}]} {
    %c0 = arith.constant 0 : index
    %c0_0 = arith.constant 0 : index
    %c0_1 = arith.constant 0 : index
    %c0_2 = arith.constant 0 : index
    %0 = vector.load %arg2[%c0, %c0_0, %c0_1, %c0_2] : memref<1x8x17x4xbf16, #tpu.memory_space<vmem>>, vector<1x8x17x4xbf16>
    %1 = vector.shape_cast %0 : vector<1x8x17x4xbf16> to vector<8x17x4xbf16>
    %2 = arith.extf %1 : vector<8x17x4xbf16> to vector<8x17x4xf32>
    %c0_3 = arith.constant 0 : index
    %c0_4 = arith.constant 0 : index
    %c0_5 = arith.constant 0 : index
    %c0_6 = arith.constant 0 : index
    %3 = vector.load %arg3[%c0_3, %c0_4, %c0_5, %c0_6] : memref<1x1x17x4xbf16, #tpu.memory_space<vmem>>, vector<1x1x17x4xbf16>
    %4 = vector.shape_cast %3 : vector<1x1x17x4xbf16> to vector<1x17x4xbf16>
    %5 = arith.extf %4 : vector<1x17x4xbf16> to vector<1x17x4xf32>
    %6 = vector.extract_strided_slice %2 {offsets = [1, 0, 0], sizes = [7, 17, 4], strides = [1, 1, 1]} : vector<8x17x4xf32> to vector<7x17x4xf32>
    %7 = tpu.concatenate %6, %5 in 0 : vector<7x17x4xf32>, vector<1x17x4xf32> -> vector<8x17x4xf32>
    %8 = vector.extract_strided_slice %2 {offsets = [0, 0, 0], sizes = [8, 16, 4], strides = [1, 1, 1]} : vector<8x17x4xf32> to vector<8x16x4xf32>
    %9 = vector.extract_strided_slice %2 {offsets = [0, 1, 0], sizes = [8, 16, 4], strides = [1, 1, 1]} : vector<8x17x4xf32> to vector<8x16x4xf32>
    %10 = vector.extract_strided_slice %7 {offsets = [0, 0, 0], sizes = [8, 16, 4], strides = [1, 1, 1]} : vector<8x17x4xf32> to vector<8x16x4xf32>
    %11 = vector.extract_strided_slice %7 {offsets = [0, 1, 0], sizes = [8, 16, 4], strides = [1, 1, 1]} : vector<8x17x4xf32> to vector<8x16x4xf32>
    %12 = tpu.concatenate %8, %9, %10, %11 in 2 : vector<8x16x4xf32>, vector<8x16x4xf32>, vector<8x16x4xf32>, vector<8x16x4xf32> -> vector<8x16x16xf32>
    %13 = vector.shape_cast %12 : vector<8x16x16xf32> to vector<128x16xf32>
    %14 = arith.truncf %13 : vector<128x16xf32> to vector<128x16xbf16>
    %c0_7 = arith.constant 0 : index
    %c0_8 = arith.constant 0 : index
    %15 = vector.load %arg4[%c0_7, %c0_8] : memref<16x32xbf16, #tpu.memory_space<vmem>>, vector<16x32xbf16>
    %cst = arith.constant dense<0.000000e+00> : vector<128x32xf32>
    %16 = tpu.matmul %14, %15, %cst {dimension_numbers = #tpu.dot_dimension_numbers<[1], [0], [0], [1], [0, 0, 1, 1], [], []>} : vector<128x16xbf16>, vector<16x32xbf16>, vector<128x32xf32> -> vector<128x32xf32>
    %cst_9 = arith.constant dense<0.000000e+00> : vector<16xf32>
    %17 = vector.multi_reduction <add>, %13, %cst_9 [0] : vector<128x16xf32> to vector<16xf32>
    %18 = vector.shape_cast %17 : vector<16xf32> to vector<1x16xf32>
    %c0_10 = arith.constant 0 : index
    %c0_11 = arith.constant 0 : index
    %19 = vector.load %arg4[%c0_10, %c0_11] : memref<16x32xbf16, #tpu.memory_space<vmem>>, vector<16x32xbf16>
    %20 = arith.extf %19 : vector<16x32xbf16> to vector<16x32xf32>
    %cst_12 = arith.constant dense<0.000000e+00> : vector<1x32xf32>
    %21 = tpu.matmul %18, %20, %cst_12 {dimension_numbers = #tpu.dot_dimension_numbers<[1], [0], [0], [1], [0, 0, 1, 1], [], []>} : vector<1x16xf32>, vector<16x32xf32>, vector<1x32xf32> -> vector<1x32xf32>
    %22 = vector.shape_cast %21 : vector<1x32xf32> to vector<1x1x1x32xf32>
    %c0_13 = arith.constant 0 : index
    %c0_14 = arith.constant 0 : index
    %c0_15 = arith.constant 0 : index
    %c0_16 = arith.constant 0 : index
    %23 = vector.load %arg6[%c0_13, %c0_14, %c0_15, %c0_16] : memref<1x1x1x32xf32, #tpu.memory_space<vmem>>, vector<1x1x1x32xf32>
    tpu.vector_store %arg6[%c0_13, %c0_14, %c0_15, %c0_16], %22 {strides = array<i32>} : memref<1x1x1x32xf32, #tpu.memory_space<vmem>>, vector<1x1x1x32xf32>,
    %24 = arith.mulf %16, %16 : vector<128x32xf32>
    %cst_17 = arith.constant dense<0.000000e+00> : vector<32xf32>
    %25 = vector.multi_reduction <add>, %24, %cst_17 [0] : vector<128x32xf32> to vector<32xf32>
    %26 = vector.shape_cast %25 : vector<32xf32> to vector<1x32xf32>
    %27 = vector.shape_cast %26 : vector<1x32xf32> to vector<1x1x1x32xf32>
    %c0_18 = arith.constant 0 : index
    %c0_19 = arith.constant 0 : index
    %c0_20 = arith.constant 0 : index
    %c0_21 = arith.constant 0 : index
    %28 = vector.load %arg7[%c0_18, %c0_19, %c0_20, %c0_21] : memref<1x1x1x32xf32, #tpu.memory_space<vmem>>, vector<1x1x1x32xf32>
    tpu.vector_store %arg7[%c0_18, %c0_19, %c0_20, %c0_21], %27 {strides = array<i32>} : memref<1x1x1x32xf32, #tpu.memory_space<vmem>>, vector<1x1x1x32xf32>,
    %29 = vector.shape_cast %16 : vector<128x32xf32> to vector<1x8x16x32xf32>
    %30 = arith.truncf %29 : vector<1x8x16x32xf32> to vector<1x8x16x32xbf16>
    %c0_22 = arith.constant 0 : index
    %c0_23 = arith.constant 0 : index
    %c0_24 = arith.constant 0 : index
    %c0_25 = arith.constant 0 : index
    %31 = vector.load %arg5[%c0_22, %c0_23, %c0_24, %c0_25] : memref<1x8x16x32xbf16, #tpu.memory_space<vmem>>, vector<1x8x16x32xbf16>
    tpu.vector_store %arg5[%c0_22, %c0_23, %c0_24, %c0_25], %30 {strides = array<i32>} : memref<1x8x16x32xbf16, #tpu.memory_space<vmem>>, vector<1x8x16x32xbf16>,
    return
  }
  func.func @transform_0(%arg0: i32, %arg1: i32) -> (i32, i32, i32, i32) {
    %c0_i32 = arith.constant 0 : i32
    %c0_i32_0 = arith.constant 0 : i32
    %c0_i32_1 = arith.constant 0 : i32
    return %arg0, %arg1, %c0_i32, %c0_i32_0 : i32, i32, i32, i32
  }
  func.func @transform_1(%arg0: i32, %arg1: i32) -> (i32, i32, i32, i32) {
    %c1_i32 = arith.constant 1 : i32
    %0 = arith.addi %arg1, %c1_i32 : i32
    %c8_i32 = arith.constant 8 : i32
    %1 = arith.muli %0, %c8_i32 : i32
    %c0_i32 = arith.constant 0 : i32
    %c0_i32_0 = arith.constant 0 : i32
    %c0_i32_1 = arith.constant 0 : i32
    return %arg0, %1, %c0_i32, %c0_i32_0 : i32, i32, i32, i32
  }
  func.func @transform_2(%arg0: i32, %arg1: i32) -> (i32, i32) {
    %c0_i32 = arith.constant 0 : i32
    %c0_i32_0 = arith.constant 0 : i32
    %c0_i32_1 = arith.constant 0 : i32
    return %c0_i32, %c0_i32_0 : i32, i32
  }
  func.func @transform_3(%arg0: i32, %arg1: i32) -> (i32, i32, i32, i32) {
    %c0_i32 = arith.constant 0 : i32
    %c0_i32_0 = arith.constant 0 : i32
    %c0_i32_1 = arith.constant 0 : i32
    return %arg0, %arg1, %c0_i32, %c0_i32_0 : i32, i32, i32, i32
  }
  func.func @transform_4(%arg0: i32, %arg1: i32) -> (i32, i32, i32, i32) {
    %c0_i32 = arith.constant 0 : i32
    %c0_i32_0 = arith.constant 0 : i32
    %c0_i32_1 = arith.constant 0 : i32
    return %arg0, %arg1, %c0_i32, %c0_i32_0 : i32, i32, i32, i32
  }
  func.func @transform_5(%arg0: i32, %arg1: i32) -> (i32, i32, i32, i32) {
    %c0_i32 = arith.constant 0 : i32
    %c0_i32_0 = arith.constant 0 : i32
    %c0_i32_1 = arith.constant 0 : i32
    return %arg0, %arg1, %c0_i32, %c0_i32_0 : i32, i32, i32, i32
  }
}

module attributes {stable_mosaic.version = 11 : i64} {
  func.func @_bn_relu_kernel(%arg0: i32, %arg1: i32, %arg2: memref<1x8x16x32xbf16, #tpu.memory_space<vmem>>, %arg3: memref<1x32xf32, #tpu.memory_space<vmem>>, %arg4: memref<1x32xf32, #tpu.memory_space<vmem>>, %arg5: memref<1x8x16x32xbf16, #tpu.memory_space<vmem>>) attributes {dimension_semantics = [#tpu.dimension_semantics<parallel>, #tpu.dimension_semantics<parallel>], iteration_bounds = array<i64: 2, 2>, scalar_prefetch = 0 : i64, scratch_operands = 0 : i64, tpu.core_type = #tpu.core_type<tc>, window_params = [{transform_indices = @transform_0, window_bounds = array<i64: 1, 8, 16, 32>}, {pipeline_mode = #tpu.pipeline_mode<synchronous>, transform_indices = @transform_1, window_bounds = array<i64: 1, 32>}, {pipeline_mode = #tpu.pipeline_mode<synchronous>, transform_indices = @transform_2, window_bounds = array<i64: 1, 32>}, {transform_indices = @transform_3, window_bounds = array<i64: 1, 8, 16, 32>}]} {
    %c0 = arith.constant 0 : index
    %c0_0 = arith.constant 0 : index
    %c0_1 = arith.constant 0 : index
    %c0_2 = arith.constant 0 : index
    %0 = vector.load %arg2[%c0, %c0_0, %c0_1, %c0_2] : memref<1x8x16x32xbf16, #tpu.memory_space<vmem>>, vector<1x8x16x32xbf16>
    %1 = arith.extf %0 : vector<1x8x16x32xbf16> to vector<1x8x16x32xf32>
    %c0_3 = arith.constant 0 : index
    %c0_4 = arith.constant 0 : index
    %2 = vector.load %arg3[%c0_3, %c0_4] : memref<1x32xf32, #tpu.memory_space<vmem>>, vector<1x32xf32>
    %3 = vector.shape_cast %2 : vector<1x32xf32> to vector<1x1x1x32xf32>
    %4 = vector.broadcast %3 : vector<1x1x1x32xf32> to vector<1x8x16x32xf32>
    %5 = arith.mulf %1, %4 : vector<1x8x16x32xf32>
    %c0_5 = arith.constant 0 : index
    %c0_6 = arith.constant 0 : index
    %6 = vector.load %arg4[%c0_5, %c0_6] : memref<1x32xf32, #tpu.memory_space<vmem>>, vector<1x32xf32>
    %7 = vector.shape_cast %6 : vector<1x32xf32> to vector<1x1x1x32xf32>
    %8 = vector.broadcast %7 : vector<1x1x1x32xf32> to vector<1x8x16x32xf32>
    %9 = arith.addf %5, %8 : vector<1x8x16x32xf32>
    %cst = arith.constant 0.000000e+00 : f32
    %10 = vector.broadcast %cst : f32 to vector<1x8x16x32xf32>
    %11 = arith.maximumf %9, %10 : vector<1x8x16x32xf32>
    %12 = arith.truncf %11 : vector<1x8x16x32xf32> to vector<1x8x16x32xbf16>
    %c0_7 = arith.constant 0 : index
    %c0_8 = arith.constant 0 : index
    %c0_9 = arith.constant 0 : index
    %c0_10 = arith.constant 0 : index
    %13 = vector.load %arg5[%c0_7, %c0_8, %c0_9, %c0_10] : memref<1x8x16x32xbf16, #tpu.memory_space<vmem>>, vector<1x8x16x32xbf16>
    tpu.vector_store %arg5[%c0_7, %c0_8, %c0_9, %c0_10], %12 {strides = array<i32>} : memref<1x8x16x32xbf16, #tpu.memory_space<vmem>>, vector<1x8x16x32xbf16>,
    return
  }
  func.func @transform_0(%arg0: i32, %arg1: i32) -> (i32, i32, i32, i32) {
    %c0_i32 = arith.constant 0 : i32
    %c0_i32_0 = arith.constant 0 : i32
    %c0_i32_1 = arith.constant 0 : i32
    return %arg0, %arg1, %c0_i32, %c0_i32_0 : i32, i32, i32, i32
  }
  func.func @transform_1(%arg0: i32, %arg1: i32) -> (i32, i32) {
    %c0_i32 = arith.constant 0 : i32
    %c0_i32_0 = arith.constant 0 : i32
    %c0_i32_1 = arith.constant 0 : i32
    return %c0_i32, %c0_i32_0 : i32, i32
  }
  func.func @transform_2(%arg0: i32, %arg1: i32) -> (i32, i32) {
    %c0_i32 = arith.constant 0 : i32
    %c0_i32_0 = arith.constant 0 : i32
    %c0_i32_1 = arith.constant 0 : i32
    return %c0_i32, %c0_i32_0 : i32, i32
  }
  func.func @transform_3(%arg0: i32, %arg1: i32) -> (i32, i32, i32, i32) {
    %c0_i32 = arith.constant 0 : i32
    %c0_i32_0 = arith.constant 0 : i32
    %c0_i32_1 = arith.constant 0 : i32
    return %arg0, %arg1, %c0_i32, %c0_i32_0 : i32, i32, i32, i32
  }
}

</mosaic_0001>

<llo_original>
// kernel: tile.18
$region0: #{tile.18}
  #allocation0 [shape = 's32[1]{0}', space=sflag, size = 0x4, scoped, tag = 'scoped memory for tile.18']
  %s0 = inlined_call_operand.vmem [shape: f32[8], index: 0, kind: input, shape index: {}]
  %s1 = inlined_call_operand.vmem [shape: f32[4,8], index: 1, kind: output, shape index: {}]
  // Predicated region
  $region2: #{tile.18} parent=0 // pred_check
    _
  $region3: #{tile.18} parent=0 // pred_check_branch
    %3 = sbr.rel (0) target = $region5
  $region4: #{tile.18} parent=0 // pred_region
    _
  $region5: #{tile.18} parent=0 // pred_fallthru
    _
  %v4 = vld [vmem:[%s0] ss:$0 sm:$0xff]
  %5 = vst [vmem:[%s1] sm:$0xf] %v4

// kernel: tile.19
$region0: #{tile.19}
  %s0 = inlined_call_operand.vmem [shape: f32[4,8], index: 0, kind: input, shape index: {}]
  %s1 = inlined_call_operand.vmem [shape: f32[1,32], index: 1, kind: output, shape index: {}]
  $region1: #{tile.19} parent=0
    #allocation0 [shape = 'u8[4096]{0}', space=vmem, size = 0x1000, scoped, tag = 'scoped mem for output reshape']
    #allocation1 [shape = 'u8[4096]{0}', space=vmem, size = 0x1000, scoped, tag = 'scoped mem for input reshape']
    %s3 = sshllo.u32 0, 4
    %v4 = vld [vmem:[%s0] sm:%s3]
    %5 = vst [vmem:[#allocation1] sm:%s3] %v4
    %v6 = vld [vmem:[#allocation1] sm:$0x1]
    %vm7 = vcmask 64512
    %8 = vst.msk [vmem:[#allocation0] sm:$0x1] %vm7, %v6
    %s9 = scalar_lea.vmem [#allocation1], 3
    %v10 = vld [vmem:[%s9] sm:$0x1]
    %11 = vrot.lane.b32.xlu0 %v10, 24
    %v12 = vpop.permute.xlu0 %11
    %vm13 = vcmask 261312
    %14 = vst.msk [vmem:[#allocation0] sm:$0x1] %vm13, %v12
    %s15 = scalar_lea.vmem [#allocation1], 2
    %v16 = vld [vmem:[%s15] sm:$0x1]
    %17 = vrot.lane.b32.xlu0 %v16, 16
    %v18 = vpop.permute.xlu0 %17
    %vm19 = vcmask 195712
    %20 = vst.msk [vmem:[#allocation0] sm:$0x1] %vm19, %v18
    %s21 = scalar_lea.vmem [#allocation1], 1
    %v22 = vld [vmem:[%s21] sm:$0x1]
    %23 = vrot.lane.b32.xlu0 %v22, 8
    %v24 = vpop.permute.xlu0 %23
    %vm25 = vcmask 130112
    %26 = vst.msk [vmem:[#allocation0] sm:$0x1] %vm25, %v24
    %s28 = sshllo.u32 0, 1
    %v30 = vld [vmem:[#allocation0] sm:%s28]
    %s31 = sshllo.u32 0, 1
    %32 = vst [vmem:[%s1] sm:%s31] %v30

// kernel: deconv2d_forward.3
$region0: #{deconv2d_forward.3}
  #allocation0 [shape = 'u32[]', space=smem, size = 0x4, offset = 0x4, fixed_abs, tag = 'smem constant byte address 0x4 - core index']
  #allocation1 [shape = 'u32[144,128]{1,0:T(1,128)}', space=vmem, size = 0x12000, scoped, tag = 'internal scratch']
  %s0 = inlined_call_operand.vmem [shape: bf16[2,16,16,32], index: 0, kind: input, shape index: {}, may-alias: {0,3}]
  %s1 = inlined_call_operand.vmem [shape: f32[1,32], index: 1, kind: input, shape index: {}]
  %s2 = inlined_call_operand.vmem [shape: f32[1,32], index: 2, kind: input, shape index: {}]
  %s3 = inlined_call_operand.vmem [shape: bf16[2,16,16,32], index: 3, kind: output, shape index: {}, may-alias: {0,3}]
  %s4 = sld [smem:[#allocation0]]
  $region45: #{deconv2d_forward.3} parent=0
    _
  %s6 = ssub.s32 1, %s4
  %s7 = scalar_select 0, %s6, %s4
  loop: start=0, step=1, limit=6
  $region2: #{deconv2d_forward.3} parent=0 // loop_pre_header
    _
  $region3: #{deconv2d_forward.3} parent=0 // loop_header
    %s9 = sphi 0, %s13
    %p10 = scmp.ge.s32.totalorder %s9, 6
    %s16 = sphi 0, %s28
    %s17 = sphi 0, %s24
    %s18 = sphi 0, %s16
    %s19 = sphi 0, %s17
    %s20 = sphi 0, %s18
    %s21 = sphi 0, %s19
    %s33 = sphi 0, %s35
    %s36 = sphi 0, %s33
    %s37 = sphi 0, %s36
    %s53 = sphi 0, %s37
    %s57 = sphi 0, %s57
    %s59 = sphi 0, %s57
    %s60 = sphi 0, %s59
    %s74 = sphi 0, %s60
    %s78 = sphi 0, %s78
    %s80 = sphi 0, %s78
    %s81 = sphi 0, %s80
    %s95 = sphi 0, %s81
    %s103 = sphi 0, %s105
    %s106 = sphi 0, %s103
    %s107 = sphi 0, %s106
    %s123 = sphi 0, %s107
  $region4: #{deconv2d_forward.3} parent=0 // loop_header_branch
    %12 = sbr.rel (%p10) target = $region8
  $region5: #{deconv2d_forward.3} parent=0 // loop_body
    %s14 = ssub.s32 %s9, 1
    %s15 = ssub.s32 %s9, 2
    %s22 = sadd.s32 1, %s17
    %p23 = scmp.ge.s32.totalorder %s22, 2
    %s24 = scalar_select %p23, 0, %s22
    %s25 = sadd.s32 1, %s16
    %s26 = scalar_select %p23, %s25, %s16
    %p27 = scmp.ge.s32.totalorder %s26, 2
    %s28 = scalar_select %p27, 0, %s26
    %s29 = ssub.s32 %s16, %s28
    %s30 = ssub.s32 %s17, %s24
    %s31 = sor.u32 %s29, %s30
    %p32 = scmp.eq.s32.totalorder %s31, 0
    %s34 = sadd.s32 %s33, 1
    %s35 = scalar_select %p32, %s33, %s34
    %p38 = pneg %p32
    %p39 = scmp.eq.s32.totalorder %s9, 3
    %p40 = por %p38, %p39
    %p41 = scmp.ne.s32.totalorder %s33, %s36
    %p42 = scmp.eq.s32.totalorder %s9, 0
    %p43 = por %p41, %p42
    %p44 = scmp.ne.s32.totalorder %s33, %s36
    %p45 = scmp.eq.s32.totalorder %s14, 3
    %p46 = por %p44, %p45
    %p47 = scmp.ne.s32.totalorder %s36, %s37
    %p48 = scmp.eq.s32.totalorder %s14, 0
    %p49 = por %p47, %p48
    %p50 = scmp.ne.s32.totalorder %s36, %s37
    %p51 = scmp.eq.s32.totalorder %s15, 3
    %p52 = por %p50, %p51
    %p54 = scmp.ne.s32.totalorder %s37, %s53
    %p55 = scmp.eq.s32.totalorder %s15, 0
    %p56 = por %p54, %p55
    %s58 = sadd.s32 %s57, 1
    %p61 = scmp.eq.s32.totalorder %s9, 3
    %p62 = scmp.ne.s32.totalorder %s57, %s59
    %p63 = scmp.eq.s32.totalorder %s9, 0
    %p64 = por %p62, %p63
    %p65 = scmp.ne.s32.totalorder %s57, %s59
    %p66 = scmp.eq.s32.totalorder %s14, 3
    %p67 = por %p65, %p66
    %p68 = scmp.ne.s32.totalorder %s59, %s60
    %p69 = scmp.eq.s32.totalorder %s14, 0
    %p70 = por %p68, %p69
    %p71 = scmp.ne.s32.totalorder %s59, %s60
    %p72 = scmp.eq.s32.totalorder %s15, 3
    %p73 = por %p71, %p72
    %p75 = scmp.ne.s32.totalorder %s60, %s74
    %p76 = scmp.eq.s32.totalorder %s15, 0
    %p77 = por %p75, %p76
    %s79 = sadd.s32 %s78, 1
    %p82 = scmp.eq.s32.totalorder %s9, 3
    %p83 = scmp.ne.s32.totalorder %s78, %s80
    %p84 = scmp.eq.s32.totalorder %s9, 0
    %p85 = por %p83, %p84
    %p86 = scmp.ne.s32.totalorder %s78, %s80
    %p87 = scmp.eq.s32.totalorder %s14, 3
    %p88 = por %p86, %p87
    %p89 = scmp.ne.s32.totalorder %s80, %s81
    %p90 = scmp.eq.s32.totalorder %s14, 0
    %p91 = por %p89, %p90
    %p92 = scmp.ne.s32.totalorder %s80, %s81
    %p93 = scmp.eq.s32.totalorder %s15, 3
    %p94 = por %p92, %p93
    %p96 = scmp.ne.s32.totalorder %s81, %s95
    %p97 = scmp.eq.s32.totalorder %s15, 0
    %p98 = por %p96, %p97
    %s99 = ssub.s32 %s16, %s28
    %s100 = ssub.s32 %s17, %s24
    %s101 = sor.u32 %s99, %s100
    %p102 = scmp.eq.s32.totalorder %s101, 0
    %s104 = sadd.s32 %s103, 1
    %s105 = scalar_select %p102, %s103, %s104
    %p108 = pneg %p102
    %p109 = scmp.eq.s32.totalorder %s9, 3
    %p110 = por %p108, %p109
    %p111 = scmp.ne.s32.totalorder %s103, %s106
    %p112 = scmp.eq.s32.totalorder %s9, 0
    %p113 = por %p111, %p112
    %p114 = scmp.ne.s32.totalorder %s103, %s106
    %p115 = scmp.eq.s32.totalorder %s14, 3
    %p116 = por %p114, %p115
    %p117 = scmp.ne.s32.totalorder %s106, %s107
    %p118 = scmp.eq.s32.totalorder %s14, 0
    %p119 = por %p117, %p118
    %p120 = scmp.ne.s32.totalorder %s106, %s107
    %p121 = scmp.eq.s32.totalorder %s15, 3
    %p122 = por %p120, %p121
    %p124 = scmp.ne.s32.totalorder %s107, %s123
    %p125 = scmp.eq.s32.totalorder %s15, 0
    %p126 = por %p124, %p125
    %p127 = scmp.le.s32.totalorder 1, %s9
    %p128 = scmp.lt.s32.totalorder %s9, 5
    %p129 = pnand %p127, %p128
    %p130 = pneg %p129
    // Predicated region
    $region9: #{deconv2d_forward.3} parent=5 // pred_check
      _
    $region10: #{deconv2d_forward.3} parent=5 // pred_check_branch
      %132 = sbr.rel (%p129) target = $region12
    $region11: #{deconv2d_forward.3} parent=5 // pred_region
      %s133 = ssub.s32 %s9, 1
      // Predicated region
      $region13: #{deconv2d_forward.3} parent=11 // pred_check
        %p134 = pneg %p70
      $region14: #{deconv2d_forward.3} parent=11 // pred_check_branch
        %136 = sbr.rel (%p134) target = $region16
      $region15: #{deconv2d_forward.3} parent=11 // pred_region
        _
      $region16: #{deconv2d_forward.3} parent=11 // pred_fallthru
        _
      // Predicated region
      $region17: #{deconv2d_forward.3} parent=11 // pred_check
        %p137 = pneg %p91
      $region18: #{deconv2d_forward.3} parent=11 // pred_check_branch
        %139 = sbr.rel (%p137) target = $region20
      $region19: #{deconv2d_forward.3} parent=11 // pred_region
        _
      $region20: #{deconv2d_forward.3} parent=11 // pred_fallthru
        _
    $region12: #{deconv2d_forward.3} parent=5 // pred_fallthru
      _
    %p140 = scmp.lt.s32.totalorder %s9, 4
    // Predicated region
    $region21: #{deconv2d_forward.3} parent=5 // pred_check
      %p141 = pneg %p140
    $region22: #{deconv2d_forward.3} parent=5 // pred_check_branch
      %143 = sbr.rel (%p141) target = $region24
    $region23: #{deconv2d_forward.3} parent=5 // pred_region
      // Predicated region
      $region25: #{deconv2d_forward.3} parent=23 // pred_check
        %p144 = pneg %p43
      $region26: #{deconv2d_forward.3} parent=23 // pred_check_branch
        %146 = sbr.rel (%p144) target = $region28
      $region27: #{deconv2d_forward.3} parent=23 // pred_region
        %s147 = smul.u32 8, %s17
        %p148 = scmp.lt.s32.totalorder %s16, 1
        %s149 = scalar_select %p148, %s16, 1
        %p150 = scmp.lt.s32.totalorder %s147, 15
        %s151 = scalar_select %p150, %s147, 15
        %s152 = smul.addr %s151, 2
        %s153 = smul.addr %s149, 32
        %s154 = sadd.s32 %s152, %s153
        %s155 = smul.addr %s154, 4
        %s156 = scalar_lea.vmem %s0, %s155
        %s157 = smul.u32 8, %s17
      $region28: #{deconv2d_forward.3} parent=23 // pred_fallthru
        _
    $region24: #{deconv2d_forward.3} parent=5 // pred_fallthru
      _
    %p158 = scmp.le.s32.totalorder 1, %s9
    %p159 = scmp.lt.s32.totalorder %s9, 5
    %p160 = pnand %p158, %p159
    %p161 = pneg %p160
    // Predicated region
    $region29: #{deconv2d_forward.3} parent=5 // pred_check
      _
    $region30: #{deconv2d_forward.3} parent=5 // pred_check_branch
      %163 = sbr.rel (%p160) target = $region32
    $region31: #{deconv2d_forward.3} parent=5 // pred_region
      %s164 = ssub.s32 %s9, 1
      %s165 = smul.u32 8, %s19
      %p166 = scmp.lt.s32.totalorder %s18, 1
      %s167 = scalar_select %p166, %s18, 1
      %p168 = scmp.lt.s32.totalorder %s165, 15
      %s169 = scalar_select %p168, %s165, 15
      %s170 = smul.addr %s169, 2
      %s171 = smul.addr %s167, 32
      %s172 = sadd.s32 %s170, %s171
      %s173 = smul.addr %s172, 4
      %s174 = scalar_lea.vmem %s0, %s173
      %p175 = pneg %p49
      %p176 = pneg %p46
      %p177 = pneg %p70
      %p178 = pneg %p67
      %p179 = pneg %p91
      %p180 = pneg %p88
      %p181 = pneg %p119
      %p182 = pneg %p116
      %s183 = smul.u32 8, %s19
      %p184 = scmp.lt.s32.totalorder %s18, 1
      %s185 = scalar_select %p184, %s18, 1
      %p186 = scmp.lt.s32.totalorder %s183, 15
      %s187 = scalar_select %p186, %s183, 15
      %s188 = smul.addr %s187, 2
      %s189 = smul.addr %s185, 32
      %s190 = sadd.s32 %s188, %s189
      %s191 = smul.addr %s190, 4
      %s192 = scalar_lea.vmem %s3, %s191
      %s193 = smul.u32 8, %s19
      %p194 = scmp.lt.s32.totalorder %s18, 1
      %s195 = scalar_select %p194, %s18, 1
      %p196 = scmp.lt.s32.totalorder %s193, 15
      %s197 = scalar_select %p196, %s193, 15
      %s198 = smul.addr %s197, 2
      %s199 = smul.addr %s195, 32
      %s200 = sadd.s32 %s198, %s199
      %s201 = smul.addr %s200, 4
      %s202 = scalar_lea.vmem %s0, %s201
      %s203 = smul.u32 8, %s19
      %s204 = smul.u32 8, %s19
      %p205 = scmp.lt.s32.totalorder %s18, 1
      %s206 = scalar_select %p205, %s18, 1
      %p207 = scmp.lt.s32.totalorder %s204, 15
      %s208 = scalar_select %p207, %s204, 15
      %s209 = smul.addr %s208, 2
      %s210 = smul.addr %s206, 32
      %s211 = sadd.s32 %s209, %s210
      %s212 = smul.addr %s211, 4
      %s213 = scalar_lea.vmem %s3, %s212
      %s214 = smul.u32 8, %s19
      %v215 = vld [vmem:[%s202] sm:$0xf]
      %v216 = vld [vmem:[%s202 + $0x4] sm:$0xf]
      %v217 = vld [vmem:[%s202 + $0x8] sm:$0xf]
      %v218 = vld [vmem:[%s202 + $0xc] sm:$0xf]
      %v219 = vld [vmem:[%s202 + $0x10] sm:$0xf]
      %v220 = vld [vmem:[%s202 + $0x14] sm:$0xf]
      %v221 = vld [vmem:[%s202 + $0x18] sm:$0xf]
      %v222 = vld [vmem:[%s202 + $0x1c] sm:$0xf]
      %v223 = vld [vmem:[%s202 + $0x20] sm:$0xf]
      %v224 = vld [vmem:[%s202 + $0x24] sm:$0xf]
      %v225 = vld [vmem:[%s202 + $0x28] sm:$0xf]
      %v226 = vld [vmem:[%s202 + $0x2c] sm:$0xf]
      %v227 = vld [vmem:[%s202 + $0x30] sm:$0xf]
      %v228 = vld [vmem:[%s202 + $0x34] sm:$0xf]
      %v229 = vld [vmem:[%s202 + $0x38] sm:$0xf]
      %v230 = vld [vmem:[%s202 + $0x3c] sm:$0xf]
      %v231 = vunpack.c.l.bf16 %v215
      %v232 = vunpack.c.l.bf16 %v216
      %v233 = vunpack.c.l.bf16 %v217
      %v234 = vunpack.c.l.bf16 %v218
      %v235 = vunpack.c.l.bf16 %v219
      %v236 = vunpack.c.l.bf16 %v220
      %v237 = vunpack.c.l.bf16 %v221
      %v238 = vunpack.c.l.bf16 %v222
      %v239 = vunpack.c.l.bf16 %v223
      %v240 = vunpack.c.l.bf16 %v224
      %v241 = vunpack.c.l.bf16 %v225
      %v242 = vunpack.c.l.bf16 %v226
      %v243 = vunpack.c.l.bf16 %v227
      %v244 = vunpack.c.l.bf16 %v228
      %v245 = vunpack.c.l.bf16 %v229
      %v246 = vunpack.c.l.bf16 %v230
      %v247 = vld [vmem:[%s1] sm:$0x1]
      %v249 = vlaneseq
      %v250 = vshrl.u32 %v249, 7
      %v251 = vsub.s32 0, %v250
      %v252 = vrot.slane %v247, %v251
      %v254 = vmul.f32 %v231, %v252
      %v255 = vmul.f32 %v232, %v252
      %v256 = vmul.f32 %v233, %v252
      %v257 = vmul.f32 %v234, %v252
      %v258 = vmul.f32 %v235, %v252
      %v259 = vmul.f32 %v236, %v252
      %v260 = vmul.f32 %v237, %v252
      %v261 = vmul.f32 %v238, %v252
      %v262 = vmul.f32 %v239, %v252
      %v263 = vmul.f32 %v240, %v252
      %v264 = vmul.f32 %v241, %v252
      %v265 = vmul.f32 %v242, %v252
      %v266 = vmul.f32 %v243, %v252
      %v267 = vmul.f32 %v244, %v252
      %v268 = vmul.f32 %v245, %v252
      %v269 = vmul.f32 %v246, %v252
      %v270 = vld [vmem:[%s2] sm:$0x1]
      %v272 = vlaneseq
      %v273 = vshrl.u32 %v272, 7
      %v274 = vsub.s32 0, %v273
      %v275 = vrot.slane %v270, %v274
      %v277 = vadd.f32 %v254, %v275
      %v278 = vadd.f32 %v255, %v275
      %v279 = vadd.f32 %v256, %v275
      %v280 = vadd.f32 %v257, %v275
      %v281 = vadd.f32 %v258, %v275
      %v282 = vadd.f32 %v259, %v275
      %v283 = vadd.f32 %v260, %v275
      %v284 = vadd.f32 %v261, %v275
      %v285 = vadd.f32 %v262, %v275
      %v286 = vadd.f32 %v263, %v275
      %v287 = vadd.f32 %v264, %v275
      %v288 = vadd.f32 %v265, %v275
      %v289 = vadd.f32 %v266, %v275
      %v290 = vadd.f32 %v267, %v275
      %v291 = vadd.f32 %v268, %v275
      %v292 = vadd.f32 %v269, %v275
      %v293 = vmax.f32 %v277, 0.0
      %v294 = vmax.f32 %v278, 0.0
      %v295 = vmax.f32 %v279, 0.0
      %v296 = vmax.f32 %v280, 0.0
      %v297 = vmax.f32 %v281, 0.0
      %v298 = vmax.f32 %v282, 0.0
      %v299 = vmax.f32 %v283, 0.0
      %v300 = vmax.f32 %v284, 0.0
      %v301 = vmax.f32 %v285, 0.0
      %v302 = vmax.f32 %v286, 0.0
      %v303 = vmax.f32 %v287, 0.0
      %v304 = vmax.f32 %v288, 0.0
      %v305 = vmax.f32 %v289, 0.0
      %v306 = vmax.f32 %v290, 0.0
      %v307 = vmax.f32 %v291, 0.0
      %v308 = vmax.f32 %v292, 0.0
      %v309 = vpack.c.bf16 %v294, %v293
      %v310 = vpack.c.bf16 %v296, %v295
      %v311 = vpack.c.bf16 %v298, %v297
      %v312 = vpack.c.bf16 %v300, %v299
      %v313 = vpack.c.bf16 %v302, %v301
      %v314 = vpack.c.bf16 %v304, %v303
      %v315 = vpack.c.bf16 %v306, %v305
      %v316 = vpack.c.bf16 %v308, %v307
      %v325 = vunpack.c.l.b16 %v309
      %v326 = vunpack.c.h.b16 %v309
      %v327 = vunpack.c.l.b16 %v310
      %v328 = vunpack.c.h.b16 %v310
      %v329 = vunpack.c.l.b16 %v311
      %v330 = vunpack.c.h.b16 %v311
      %v331 = vunpack.c.l.b16 %v312
      %v332 = vunpack.c.h.b16 %v312
      %v333 = vunpack.c.l.b16 %v313
      %v334 = vunpack.c.h.b16 %v313
      %v335 = vunpack.c.l.b16 %v314
      %v336 = vunpack.c.h.b16 %v314
      %v337 = vunpack.c.l.b16 %v315
      %v338 = vunpack.c.h.b16 %v315
      %v339 = vunpack.c.l.b16 %v316
      %v340 = vunpack.c.h.b16 %v316
      %v341 = vpack.c.b16 %v325, %v325
      %v342 = vpack.c.b16 %v326, %v326
      %v343 = vpack.c.b16 %v327, %v327
      %v344 = vpack.c.b16 %v328, %v328
      %v345 = vpack.c.b16 %v329, %v329
      %v346 = vpack.c.b16 %v330, %v330
      %v347 = vpack.c.b16 %v331, %v331
      %v348 = vpack.c.b16 %v332, %v332
      %v349 = vpack.c.b16 %v333, %v333
      %v350 = vpack.c.b16 %v334, %v334
      %v351 = vpack.c.b16 %v335, %v335
      %v352 = vpack.c.b16 %v336, %v336
      %v353 = vpack.c.b16 %v337, %v337
      %v354 = vpack.c.b16 %v338, %v338
      %v355 = vpack.c.b16 %v339, %v339
      %v356 = vpack.c.b16 %v340, %v340
      %vm373 = vcmask 257024
      %374 = vst.msk [vmem:[%s213] sm:$0xf] %vm373, %v341
      %375 = vst.msk [vmem:[%s213 + $0x4] sm:$0xf] %vm373, %v342
      %376 = vst.msk [vmem:[%s213 + $0x8] sm:$0xf] %vm373, %v343
      %377 = vst.msk [vmem:[%s213 + $0xc] sm:$0xf] %vm373, %v344
      %378 = vst.msk [vmem:[%s213 + $0x10] sm:$0xf] %vm373, %v345
      %379 = vst.msk [vmem:[%s213 + $0x14] sm:$0xf] %vm373, %v346
      %380 = vst.msk [vmem:[%s213 + $0x18] sm:$0xf] %vm373, %v347
      %381 = vst.msk [vmem:[%s213 + $0x1c] sm:$0xf] %vm373, %v348
      %382 = vst.msk [vmem:[%s213 + $0x20] sm:$0xf] %vm373, %v349
      %383 = vst.msk [vmem:[%s213 + $0x24] sm:$0xf] %vm373, %v350
      %384 = vst.msk [vmem:[%s213 + $0x28] sm:$0xf] %vm373, %v351
      %385 = vst.msk [vmem:[%s213 + $0x2c] sm:$0xf] %vm373, %v352
      %386 = vst.msk [vmem:[%s213 + $0x30] sm:$0xf] %vm373, %v353
      %387 = vst.msk [vmem:[%s213 + $0x34] sm:$0xf] %vm373, %v354
      %388 = vst.msk [vmem:[%s213 + $0x38] sm:$0xf] %vm373, %v355
      %389 = vst.msk [vmem:[%s213 + $0x3c] sm:$0xf] %vm373, %v356
      %s390 = smul.u32 8, %s19
      %p391 = scmp.lt.s32.totalorder %s18, 1
      %s392 = scalar_select %p391, %s18, 1
      %p393 = scmp.lt.s32.totalorder %s390, 15
      %s394 = scalar_select %p393, %s390, 15
      %s395 = smul.addr %s394, 2
      %s396 = smul.addr %s392, 32
      %s397 = sadd.s32 %s395, %s396
      %s398 = smul.addr %s397, 4
      %s399 = scalar_lea.vmem %s3, %s398
      // Predicated region
      $region33: #{deconv2d_forward.3} parent=31 // pred_check
        %p400 = pneg %p116
      $region34: #{deconv2d_forward.3} parent=31 // pred_check_branch
        %402 = sbr.rel (%p400) target = $region36
      $region35: #{deconv2d_forward.3} parent=31 // pred_region
        %s403 = smul.u32 8, %s19
      $region36: #{deconv2d_forward.3} parent=31 // pred_fallthru
        _
    $region32: #{deconv2d_forward.3} parent=5 // pred_fallthru
      _
    %p404 = scmp.le.s32.totalorder 2, %s9
    // Predicated region
    $region37: #{deconv2d_forward.3} parent=5 // pred_check
      %p405 = pneg %p404
    $region38: #{deconv2d_forward.3} parent=5 // pred_check_branch
      %407 = sbr.rel (%p405) target = $region40
    $region39: #{deconv2d_forward.3} parent=5 // pred_region
      %s408 = ssub.s32 %s9, 2
      // Predicated region
      $region41: #{deconv2d_forward.3} parent=39 // pred_check
        %p409 = pneg %p122
      $region42: #{deconv2d_forward.3} parent=39 // pred_check_branch
        %411 = sbr.rel (%p409) target = $region44
      $region43: #{deconv2d_forward.3} parent=39 // pred_region
        %s412 = smul.u32 8, %s21
        %p413 = scmp.lt.s32.totalorder %s20, 1
        %s414 = scalar_select %p413, %s20, 1
        %p415 = scmp.lt.s32.totalorder %s412, 15
        %s416 = scalar_select %p415, %s412, 15
        %s417 = smul.addr %s416, 2
        %s418 = smul.addr %s414, 32
        %s419 = sadd.s32 %s417, %s418
        %s420 = smul.addr %s419, 4
        %s421 = scalar_lea.vmem %s3, %s420
      $region44: #{deconv2d_forward.3} parent=39 // pred_fallthru
        _
    $region40: #{deconv2d_forward.3} parent=5 // pred_fallthru
      _
  $region6: #{deconv2d_forward.3} parent=0 // loop_footer
    %s13 = sadd.s32 1, %s9
  $region7: #{deconv2d_forward.3} parent=0 // loop_footer_branch
    %8 = sbr.rel target = $region3
  $region8: #{deconv2d_forward.3} parent=0 // loop_exit
    _

// kernel: deconv2d_forward.2
$region0: #{deconv2d_forward.2}
  #allocation0 [shape = 'u32[]', space=smem, size = 0x4, offset = 0x4, fixed_abs, tag = 'smem constant byte address 0x4 - core index']
  #allocation1 [shape = 'u32[144,128]{1,0:T(1,128)}', space=vmem, size = 0x12000, scoped, tag = 'internal scratch']
  %s0 = inlined_call_operand.vmem [shape: bf16[2,17,17,4], index: 0, kind: input, shape index: {}, may-alias: {0,1}]
  %s1 = inlined_call_operand.vmem [shape: bf16[2,17,17,4], index: 1, kind: input, shape index: {}, may-alias: {0,1}]
  %s2 = inlined_call_operand.vmem [shape: bf16[16,32], index: 2, kind: input, shape index: {}]
  %s3 = inlined_call_operand.vmem [shape: bf16[2,16,16,32], index: 3, kind: output, shape index: {0}]
  %s4 = inlined_call_operand.vmem [shape: f32[2,2,1,32], index: 4, kind: output, shape index: {1}]
  %s5 = inlined_call_operand.vmem [shape: f32[2,2,1,32], index: 5, kind: output, shape index: {2}]
  %6 = xla_tuple %s3, %s4, %s5
  %s7 = sld [smem:[#allocation0]]
  $region61: #{deconv2d_forward.2} parent=0
    _
  %s9 = ssub.s32 1, %s7
  %s10 = scalar_select 0, %s9, %s7
  loop: start=0, step=1, limit=6
  $region2: #{deconv2d_forward.2} parent=0 // loop_pre_header
    _
  $region3: #{deconv2d_forward.2} parent=0 // loop_header
    %s12 = sphi 0, %s16
    %p13 = scmp.ge.s32.totalorder %s12, 6
    %s19 = sphi 0, %s31
    %s20 = sphi 0, %s27
    %s21 = sphi 0, %s19
    %s22 = sphi 0, %s20
    %s23 = sphi 0, %s21
    %s24 = sphi 0, %s22
    %s36 = sphi 0, %s38
    %s39 = sphi 0, %s36
    %s40 = sphi 0, %s39
    %s56 = sphi 0, %s40
    %s68 = sphi 0, %s70
    %s71 = sphi 0, %s68
    %s72 = sphi 0, %s71
    %s88 = sphi 0, %s72
    %s92 = sphi 0, %s92
    %s94 = sphi 0, %s92
    %s95 = sphi 0, %s94
    %s109 = sphi 0, %s95
    %s117 = sphi 0, %s119
    %s120 = sphi 0, %s117
    %s121 = sphi 0, %s120
    %s137 = sphi 0, %s121
    %s145 = sphi 0, %s147
    %s148 = sphi 0, %s145
    %s149 = sphi 0, %s148
    %s165 = sphi 0, %s149
    %s173 = sphi 0, %s175
    %s176 = sphi 0, %s173
    %s177 = sphi 0, %s176
    %s193 = sphi 0, %s177
  $region4: #{deconv2d_forward.2} parent=0 // loop_header_branch
    %15 = sbr.rel (%p13) target = $region8
  $region5: #{deconv2d_forward.2} parent=0 // loop_body
    %s17 = ssub.s32 %s12, 1
    %s18 = ssub.s32 %s12, 2
    %s25 = sadd.s32 1, %s20
    %p26 = scmp.ge.s32.totalorder %s25, 2
    %s27 = scalar_select %p26, 0, %s25
    %s28 = sadd.s32 1, %s19
    %s29 = scalar_select %p26, %s28, %s19
    %p30 = scmp.ge.s32.totalorder %s29, 2
    %s31 = scalar_select %p30, 0, %s29
    %s32 = ssub.s32 %s19, %s31
    %s33 = ssub.s32 %s20, %s27
    %s34 = sor.u32 %s32, %s33
    %p35 = scmp.eq.s32.totalorder %s34, 0
    %s37 = sadd.s32 %s36, 1
    %s38 = scalar_select %p35, %s36, %s37
    %p41 = pneg %p35
    %p42 = scmp.eq.s32.totalorder %s12, 3
    %p43 = por %p41, %p42
    %p44 = scmp.ne.s32.totalorder %s36, %s39
    %p45 = scmp.eq.s32.totalorder %s12, 0
    %p46 = por %p44, %p45
    %p47 = scmp.ne.s32.totalorder %s36, %s39
    %p48 = scmp.eq.s32.totalorder %s17, 3
    %p49 = por %p47, %p48
    %p50 = scmp.ne.s32.totalorder %s39, %s40
    %p51 = scmp.eq.s32.totalorder %s17, 0
    %p52 = por %p50, %p51
    %p53 = scmp.ne.s32.totalorder %s39, %s40
    %p54 = scmp.eq.s32.totalorder %s18, 3
    %p55 = por %p53, %p54
    %p57 = scmp.ne.s32.totalorder %s40, %s56
    %p58 = scmp.eq.s32.totalorder %s18, 0
    %p59 = por %p57, %p58
    %s60 = sadd.s32 %s20, 1
    %s61 = smul.u32 %s60, 8
    %s62 = sadd.s32 %s27, 1
    %s63 = smul.u32 %s62, 8
    %s64 = ssub.s32 %s19, %s31
    %s65 = ssub.s32 %s61, %s63
    %s66 = sor.u32 %s64, %s65
    %p67 = scmp.eq.s32.totalorder %s66, 0
    %s69 = sadd.s32 %s68, 1
    %s70 = scalar_select %p67, %s68, %s69
    %p73 = pneg %p67
    %p74 = scmp.eq.s32.totalorder %s12, 3
    %p75 = por %p73, %p74
    %p76 = scmp.ne.s32.totalorder %s68, %s71
    %p77 = scmp.eq.s32.totalorder %s12, 0
    %p78 = por %p76, %p77
    %p79 = scmp.ne.s32.totalorder %s68, %s71
    %p80 = scmp.eq.s32.totalorder %s17, 3
    %p81 = por %p79, %p80
    %p82 = scmp.ne.s32.totalorder %s71, %s72
    %p83 = scmp.eq.s32.totalorder %s17, 0
    %p84 = por %p82, %p83
    %p85 = scmp.ne.s32.totalorder %s71, %s72
    %p86 = scmp.eq.s32.totalorder %s18, 3
    %p87 = por %p85, %p86
    %p89 = scmp.ne.s32.totalorder %s72, %s88
    %p90 = scmp.eq.s32.totalorder %s18, 0
    %p91 = por %p89, %p90
    %s93 = sadd.s32 %s92, 1
    %p96 = scmp.eq.s32.totalorder %s12, 3
    %p97 = scmp.ne.s32.totalorder %s92, %s94
    %p98 = scmp.eq.s32.totalorder %s12, 0
    %p99 = por %p97, %p98
    %p100 = scmp.ne.s32.totalorder %s92, %s94
    %p101 = scmp.eq.s32.totalorder %s17, 3
    %p102 = por %p100, %p101
    %p103 = scmp.ne.s32.totalorder %s94, %s95
    %p104 = scmp.eq.s32.totalorder %s17, 0
    %p105 = por %p103, %p104
    %p106 = scmp.ne.s32.totalorder %s94, %s95
    %p107 = scmp.eq.s32.totalorder %s18, 3
    %p108 = por %p106, %p107
    %p110 = scmp.ne.s32.totalorder %s95, %s109
    %p111 = scmp.eq.s32.totalorder %s18, 0
    %p112 = por %p110, %p111
    %s113 = ssub.s32 %s19, %s31
    %s114 = ssub.s32 %s20, %s27
    %s115 = sor.u32 %s113, %s114
    %p116 = scmp.eq.s32.totalorder %s115, 0
    %s118 = sadd.s32 %s117, 1
    %s119 = scalar_select %p116, %s117, %s118
    %p122 = pneg %p116
    %p123 = scmp.eq.s32.totalorder %s12, 3
    %p124 = por %p122, %p123
    %p125 = scmp.ne.s32.totalorder %s117, %s120
    %p126 = scmp.eq.s32.totalorder %s12, 0
    %p127 = por %p125, %p126
    %p128 = scmp.ne.s32.totalorder %s117, %s120
    %p129 = scmp.eq.s32.totalorder %s17, 3
    %p130 = por %p128, %p129
    %p131 = scmp.ne.s32.totalorder %s120, %s121
    %p132 = scmp.eq.s32.totalorder %s17, 0
    %p133 = por %p131, %p132
    %p134 = scmp.ne.s32.totalorder %s120, %s121
    %p135 = scmp.eq.s32.totalorder %s18, 3
    %p136 = por %p134, %p135
    %p138 = scmp.ne.s32.totalorder %s121, %s137
    %p139 = scmp.eq.s32.totalorder %s18, 0
    %p140 = por %p138, %p139
    %s141 = ssub.s32 %s19, %s31
    %s142 = ssub.s32 %s20, %s27
    %s143 = sor.u32 %s141, %s142
    %p144 = scmp.eq.s32.totalorder %s143, 0
    %s146 = sadd.s32 %s145, 1
    %s147 = scalar_select %p144, %s145, %s146
    %p150 = pneg %p144
    %p151 = scmp.eq.s32.totalorder %s12, 3
    %p152 = por %p150, %p151
    %p153 = scmp.ne.s32.totalorder %s145, %s148
    %p154 = scmp.eq.s32.totalorder %s12, 0
    %p155 = por %p153, %p154
    %p156 = scmp.ne.s32.totalorder %s145, %s148
    %p157 = scmp.eq.s32.totalorder %s17, 3
    %p158 = por %p156, %p157
    %p159 = scmp.ne.s32.totalorder %s148, %s149
    %p160 = scmp.eq.s32.totalorder %s17, 0
    %p161 = por %p159, %p160
    %p162 = scmp.ne.s32.totalorder %s148, %s149
    %p163 = scmp.eq.s32.totalorder %s18, 3
    %p164 = por %p162, %p163
    %p166 = scmp.ne.s32.totalorder %s149, %s165
    %p167 = scmp.eq.s32.totalorder %s18, 0
    %p168 = por %p166, %p167
    %s169 = ssub.s32 %s19, %s31
    %s170 = ssub.s32 %s20, %s27
    %s171 = sor.u32 %s169, %s170
    %p172 = scmp.eq.s32.totalorder %s171, 0
    %s174 = sadd.s32 %s173, 1
    %s175 = scalar_select %p172, %s173, %s174
    %p178 = pneg %p172
    %p179 = scmp.eq.s32.totalorder %s12, 3
    %p180 = por %p178, %p179
    %p181 = scmp.ne.s32.totalorder %s173, %s176
    %p182 = scmp.eq.s32.totalorder %s12, 0
    %p183 = por %p181, %p182
    %p184 = scmp.ne.s32.totalorder %s173, %s176
    %p185 = scmp.eq.s32.totalorder %s17, 3
    %p186 = por %p184, %p185
    %p187 = scmp.ne.s32.totalorder %s176, %s177
    %p188 = scmp.eq.s32.totalorder %s17, 0
    %p189 = por %p187, %p188
    %p190 = scmp.ne.s32.totalorder %s176, %s177
    %p191 = scmp.eq.s32.totalorder %s18, 3
    %p192 = por %p190, %p191
    %p194 = scmp.ne.s32.totalorder %s177, %s193
    %p195 = scmp.eq.s32.totalorder %s18, 0
    %p196 = por %p194, %p195
    %p197 = scmp.le.s32.totalorder 1, %s12
    %p198 = scmp.lt.s32.totalorder %s12, 5
    %p199 = pnand %p197, %p198
    %p200 = pneg %p199
    // Predicated region
    $region9: #{deconv2d_forward.2} parent=5 // pred_check
      _
    $region10: #{deconv2d_forward.2} parent=5 // pred_check_branch
      %202 = sbr.rel (%p199) target = $region12
    $region11: #{deconv2d_forward.2} parent=5 // pred_region
      %s203 = ssub.s32 %s12, 1
      // Predicated region
      $region13: #{deconv2d_forward.2} parent=11 // pred_check
        %p204 = pneg %p105
      $region14: #{deconv2d_forward.2} parent=11 // pred_check_branch
        %206 = sbr.rel (%p204) target = $region16
      $region15: #{deconv2d_forward.2} parent=11 // pred_region
        _
      $region16: #{deconv2d_forward.2} parent=11 // pred_fallthru
        _
    $region12: #{deconv2d_forward.2} parent=5 // pred_fallthru
      _
    %p207 = scmp.lt.s32.totalorder %s12, 4
    // Predicated region
    $region17: #{deconv2d_forward.2} parent=5 // pred_check
      %p208 = pneg %p207
    $region18: #{deconv2d_forward.2} parent=5 // pred_check_branch
      %210 = sbr.rel (%p208) target = $region20
    $region19: #{deconv2d_forward.2} parent=5 // pred_region
      // Predicated region
      $region21: #{deconv2d_forward.2} parent=19 // pred_check
        %p211 = pneg %p46
      $region22: #{deconv2d_forward.2} parent=19 // pred_check_branch
        %213 = sbr.rel (%p211) target = $region24
      $region23: #{deconv2d_forward.2} parent=19 // pred_region
        %s214 = smul.u32 8, %s20
        %s215 = ssub.s32 17, %s214
        %p216 = scmp.lt.s32.totalorder %s215, 8
        %s217 = scalar_select %p216, %s215, 8
        %s218 = smul.u32 64, %s217
        %s219 = smul.u32 %s218, 3
        %p220 = scmp.lt.s32.totalorder %s19, 1
        %s221 = scalar_select %p220, %s19, 1
        %p222 = scmp.lt.s32.totalorder %s214, 16
        %s223 = scalar_select %p222, %s214, 16
        %s224 = smul.addr %s223, 3
        %s225 = smul.addr %s221, 51
        %s226 = sadd.s32 %s224, %s225
        %s227 = smul.addr %s226, 4
        %s228 = scalar_lea.vmem %s0, %s227
        %s229 = smul.u32 8, %s20
        %s230 = ssub.s32 17, %s229
        %p231 = scmp.lt.s32.totalorder %s230, 8
        %s232 = scalar_select %p231, %s230, 8
        %s233 = smul.u32 64, %s232
        %s234 = smul.u32 %s233, 3
      $region24: #{deconv2d_forward.2} parent=19 // pred_fallthru
        _
      // Predicated region
      $region25: #{deconv2d_forward.2} parent=19 // pred_check
        %p235 = pneg %p78
      $region26: #{deconv2d_forward.2} parent=19 // pred_check_branch
        %237 = sbr.rel (%p235) target = $region28
      $region27: #{deconv2d_forward.2} parent=19 // pred_region
        %s238 = sadd.s32 %s20, 1
        %s239 = smul.u32 %s238, 8
        %p240 = scmp.lt.s32.totalorder %s19, 1
        %s241 = scalar_select %p240, %s19, 1
        %p242 = scmp.lt.s32.totalorder %s239, 16
        %s243 = scalar_select %p242, %s239, 16
        %s244 = smul.addr %s243, 3
        %s245 = smul.addr %s241, 51
        %s246 = sadd.s32 %s244, %s245
        %s247 = smul.addr %s246, 4
        %s248 = scalar_lea.vmem %s1, %s247
        %s249 = sadd.s32 %s20, 1
        %s250 = smul.u32 %s249, 8
      $region28: #{deconv2d_forward.2} parent=19 // pred_fallthru
        _
    $region20: #{deconv2d_forward.2} parent=5 // pred_fallthru
      _
    %p251 = scmp.le.s32.totalorder 1, %s12
    %p252 = scmp.lt.s32.totalorder %s12, 5
    %p253 = pnand %p251, %p252
    %p254 = pneg %p253
    // Predicated region
    $region29: #{deconv2d_forward.2} parent=5 // pred_check
      _
    $region30: #{deconv2d_forward.2} parent=5 // pred_check_branch
      %256 = sbr.rel (%p253) target = $region32
    $region31: #{deconv2d_forward.2} parent=5 // pred_region
      %s257 = ssub.s32 %s12, 1
      %s258 = smul.u32 8, %s22
      %s259 = ssub.s32 17, %s258
      %p260 = scmp.lt.s32.totalorder %s259, 8
      %s261 = scalar_select %p260, %s259, 8
      %s262 = smul.u32 64, %s261
      %s263 = smul.u32 %s262, 3
      %p264 = scmp.lt.s32.totalorder %s21, 1
      %s265 = scalar_select %p264, %s21, 1
      %p266 = scmp.lt.s32.totalorder %s258, 16
      %s267 = scalar_select %p266, %s258, 16
      %s268 = smul.addr %s267, 3
      %s269 = smul.addr %s265, 51
      %s270 = sadd.s32 %s268, %s269
      %s271 = smul.addr %s270, 4
      %s272 = scalar_lea.vmem %s0, %s271
      %p273 = pneg %p52
      %p274 = pneg %p49
      %s275 = sadd.s32 %s22, 1
      %s276 = smul.u32 %s275, 8
      %p277 = scmp.lt.s32.totalorder %s21, 1
      %s278 = scalar_select %p277, %s21, 1
      %p279 = scmp.lt.s32.totalorder %s276, 16
      %s280 = scalar_select %p279, %s276, 16
      %s281 = smul.addr %s280, 3
      %s282 = smul.addr %s278, 51
      %s283 = sadd.s32 %s281, %s282
      %s284 = smul.addr %s283, 4
      %s285 = scalar_lea.vmem %s1, %s284
      %p286 = pneg %p84
      %p287 = pneg %p81
      %p288 = pneg %p105
      %p289 = pneg %p102
      %p290 = pneg %p133
      %p291 = pneg %p130
      %s292 = smul.u32 8, %s22
      %p293 = scmp.lt.s32.totalorder %s21, 1
      %s294 = scalar_select %p293, %s21, 1
      %p295 = scmp.lt.s32.totalorder %s292, 15
      %s296 = scalar_select %p295, %s292, 15
      %s297 = smul.addr %s296, 2
      %s298 = smul.addr %s294, 32
      %s299 = sadd.s32 %s297, %s298
      %s300 = smul.addr %s299, 4
      %s301 = scalar_lea.vmem %s3, %s300
      %p302 = pneg %p161
      %p303 = pneg %p158
      %p304 = scmp.lt.s32.totalorder %s21, 1
      %s305 = scalar_select %p304, %s21, 1
      %p306 = scmp.lt.s32.totalorder %s22, 1
      %s307 = scalar_select %p306, %s22, 1
      %s308 = smul.addr %s305, 2
      %s309 = sadd.s32 %s307, %s308
      %s310 = scalar_lea.vmem %s4, %s309
      %p311 = pneg %p189
      %p312 = pneg %p186
      %p313 = scmp.lt.s32.totalorder %s21, 1
      %s314 = scalar_select %p313, %s21, 1
      %p315 = scmp.lt.s32.totalorder %s22, 1
      %s316 = scalar_select %p315, %s22, 1
      %s317 = smul.addr %s314, 2
      %s318 = sadd.s32 %s316, %s317
      %s319 = scalar_lea.vmem %s5, %s318
      %s320 = smul.u32 8, %s22
      %s321 = ssub.s32 17, %s320
      %p322 = scmp.lt.s32.totalorder %s321, 8
      %s323 = scalar_select %p322, %s321, 8
      %s324 = smul.u32 64, %s323
      %s325 = smul.u32 %s324, 3
      %p326 = scmp.lt.s32.totalorder %s21, 1
      %s327 = scalar_select %p326, %s21, 1
      %p328 = scmp.lt.s32.totalorder %s320, 16
      %s329 = scalar_select %p328, %s320, 16
      %s330 = smul.addr %s329, 3
      %s331 = smul.addr %s327, 51
      %s332 = sadd.s32 %s330, %s331
      %s333 = smul.addr %s332, 4
      %s334 = scalar_lea.vmem %s0, %s333
      %s335 = smul.u32 8, %s22
      %s336 = ssub.s32 17, %s335
      %p337 = scmp.lt.s32.totalorder %s336, 8
      %s338 = scalar_select %p337, %s336, 8
      %s339 = smul.u32 64, %s338
      %s340 = smul.u32 %s339, 3
      %s341 = sadd.s32 %s22, 1
      %s342 = smul.u32 %s341, 8
      %p343 = scmp.lt.s32.totalorder %s21, 1
      %s344 = scalar_select %p343, %s21, 1
      %p345 = scmp.lt.s32.totalorder %s342, 16
      %s346 = scalar_select %p345, %s342, 16
      %s347 = smul.addr %s346, 3
      %s348 = smul.addr %s344, 51
      %s349 = sadd.s32 %s347, %s348
      %s350 = smul.addr %s349, 4
      %s351 = scalar_lea.vmem %s1, %s350
      %s352 = sadd.s32 %s22, 1
      %s353 = smul.u32 %s352, 8
      %s354 = smul.u32 8, %s22
      %p355 = scmp.lt.s32.totalorder %s21, 1
      %s356 = scalar_select %p355, %s21, 1
      %p357 = scmp.lt.s32.totalorder %s354, 15
      %s358 = scalar_select %p357, %s354, 15
      %s359 = smul.addr %s358, 2
      %s360 = smul.addr %s356, 32
      %s361 = sadd.s32 %s359, %s360
      %s362 = smul.addr %s361, 4
      %s363 = scalar_lea.vmem %s3, %s362
      %s364 = smul.u32 8, %s22
      %p365 = scmp.lt.s32.totalorder %s21, 1
      %s366 = scalar_select %p365, %s21, 1
      %p367 = scmp.lt.s32.totalorder %s22, 1
      %s368 = scalar_select %p367, %s22, 1
      %s369 = smul.addr %s366, 2
      %s370 = sadd.s32 %s368, %s369
      %s371 = scalar_lea.vmem %s4, %s370
      %p372 = scmp.lt.s32.totalorder %s21, 1
      %s373 = scalar_select %p372, %s21, 1
      %p374 = scmp.lt.s32.totalorder %s22, 1
      %s375 = scalar_select %p374, %s22, 1
      %s376 = smul.addr %s373, 2
      %s377 = sadd.s32 %s375, %s376
      %s378 = scalar_lea.vmem %s5, %s377
      %v380 = vld [vmem:[%s334] sm:$0xf]
      %v381 = vld [vmem:[%s334 + $0x4] sm:$0xf]
      %v382 = vld [vmem:[%s334 + $0x8] sm:$0x1]
      %v383 = vld [vmem:[%s334 + $0xc] sm:$0xf]
      %v384 = vld [vmem:[%s334 + $0x10] sm:$0xf]
      %v385 = vld [vmem:[%s334 + $0x14] sm:$0x1]
      %v386 = vld [vmem:[%s334 + $0x18] sm:$0xf]
      %v387 = vld [vmem:[%s334 + $0x1c] sm:$0xf]
      %v388 = vld [vmem:[%s334 + $0x20] sm:$0x1]
      %v389 = vld [vmem:[%s334 + $0x24] sm:$0xf]
      %v390 = vld [vmem:[%s334 + $0x28] sm:$0xf]
      %v391 = vld [vmem:[%s334 + $0x2c] sm:$0x1]
      %v392 = vld [vmem:[%s334 + $0x30] sm:$0xf]
      %v393 = vld [vmem:[%s334 + $0x34] sm:$0xf]
      %v394 = vld [vmem:[%s334 + $0x38] sm:$0x1]
      %v395 = vld [vmem:[%s334 + $0x3c] sm:$0xf]
      %v396 = vld [vmem:[%s334 + $0x40] sm:$0xf]
      %v397 = vld [vmem:[%s334 + $0x44] sm:$0x1]
      %v398 = vld [vmem:[%s334 + $0x48] sm:$0xf]
      %v399 = vld [vmem:[%s334 + $0x4c] sm:$0xf]
      %v400 = vld [vmem:[%s334 + $0x50] sm:$0x1]
      %v401 = vld [vmem:[%s334 + $0x54] sm:$0xf]
      %v402 = vld [vmem:[%s334 + $0x58] sm:$0xf]
      %v403 = vld [vmem:[%s334 + $0x5c] sm:$0x1]
      %v404 = vunpack.c.l.bf16 %v380
      %v405 = vunpack.c.l.bf16 %v381
      %v406 = vunpack.c.l.bf16 %v382
      %v407 = vunpack.c.l.bf16 %v383
      %v408 = vunpack.c.l.bf16 %v384
      %v409 = vunpack.c.l.bf16 %v385
      %v410 = vunpack.c.l.bf16 %v386
      %v411 = vunpack.c.l.bf16 %v387
      %v412 = vunpack.c.l.bf16 %v388
      %v413 = vunpack.c.l.bf16 %v389
      %v414 = vunpack.c.l.bf16 %v390
      %v415 = vunpack.c.l.bf16 %v391
      %v416 = vunpack.c.l.bf16 %v392
      %v417 = vunpack.c.l.bf16 %v393
      %v418 = vunpack.c.l.bf16 %v394
      %v419 = vunpack.c.l.bf16 %v395
      %v420 = vunpack.c.l.bf16 %v396
      %v421 = vunpack.c.l.bf16 %v397
      %v422 = vunpack.c.l.bf16 %v398
      %v423 = vunpack.c.l.bf16 %v399
      %v424 = vunpack.c.l.bf16 %v400
      %v425 = vunpack.c.l.bf16 %v401
      %v426 = vunpack.c.l.bf16 %v402
      %v427 = vunpack.c.l.bf16 %v403
      %v428 = vld [vmem:[%s351] sm:$0xf]
      %v429 = vld [vmem:[%s351 + $0x4] sm:$0xf]
      %v430 = vld [vmem:[%s351 + $0x8] sm:$0x1]
      %v431 = vunpack.c.l.bf16 %v428
      %v432 = vunpack.c.l.bf16 %v429
      %v433 = vunpack.c.l.bf16 %v430
      %vm458 = vcmask 1046528
      %v459 = vrot.slane %v404, 1
      %v460 = vrot.slane %v405, 1
      %v461 = vsel %vm458, %v459, %v460
      %v462 = vrot.slane %v406, 1
      %v463 = vsel %vm458, %v460, %v462
      %v464 = vrot.slane %v407, 1
      %v465 = vrot.slane %v408, 1
      %v466 = vsel %vm458, %v464, %v465
      %v467 = vrot.slane %v409, 1
      %v468 = vsel %vm458, %v465, %v467
      %v469 = vrot.slane %v410, 1
      %v470 = vrot.slane %v411, 1
      %v471 = vsel %vm458, %v469, %v470
      %v472 = vrot.slane %v412, 1
      %v473 = vsel %vm458, %v470, %v472
      %v474 = vrot.slane %v413, 1
      %v475 = vrot.slane %v414, 1
      %v476 = vsel %vm458, %v474, %v475
      %v477 = vrot.slane %v415, 1
      %v478 = vsel %vm458, %v475, %v477
      %v479 = vrot.slane %v416, 1
      %v480 = vrot.slane %v417, 1
      %v481 = vsel %vm458, %v479, %v480
      %v482 = vrot.slane %v418, 1
      %v483 = vsel %vm458, %v480, %v482
      %v484 = vrot.slane %v419, 1
      %v485 = vrot.slane %v420, 1
      %v486 = vsel %vm458, %v484, %v485
      %v487 = vrot.slane %v421, 1
      %v488 = vsel %vm458, %v485, %v487
      %v489 = vrot.slane %v422, 1
      %v490 = vrot.slane %v423, 1
      %v491 = vsel %vm458, %v489, %v490
      %v492 = vrot.slane %v424, 1
      %v493 = vsel %vm458, %v490, %v492
      %v494 = vrot.slane %v425, 1
      %v495 = vrot.slane %v426, 1
      %v496 = vsel %vm458, %v494, %v495
      %v497 = vrot.slane %v427, 1
      %v498 = vsel %vm458, %v495, %v497
      %499 = vrot.lane.b32.xlu0 %v461, 4
      %v500 = vpop.permute.xlu0 %499
      %501 = vrot.lane.b32.xlu0 %v463, 4
      %v502 = vpop.permute.xlu0 %501
      %503 = vrot.lane.b32.xlu0 %v466, 4
      %v504 = vpop.permute.xlu0 %503
      %505 = vrot.lane.b32.xlu0 %v468, 4
      %v506 = vpop.permute.xlu0 %505
      %507 = vrot.lane.b32.xlu0 %v471, 4
      %v508 = vpop.permute.xlu0 %507
      %509 = vrot.lane.b32.xlu0 %v473, 4
      %v510 = vpop.permute.xlu0 %509
      %511 = vrot.lane.b32.xlu0 %v476, 4
      %v512 = vpop.permute.xlu0 %511
      %513 = vrot.lane.b32.xlu0 %v478, 4
      %v514 = vpop.permute.xlu0 %513
      %515 = vrot.lane.b32.xlu0 %v481, 4
      %v516 = vpop.permute.xlu0 %515
      %517 = vrot.lane.b32.xlu0 %v483, 4
      %v518 = vpop.permute.xlu0 %517
      %519 = vrot.lane.b32.xlu0 %v486, 4
      %v520 = vpop.permute.xlu0 %519
      %521 = vrot.lane.b32.xlu0 %v488, 4
      %v522 = vpop.permute.xlu0 %521
      %523 = vrot.lane.b32.xlu0 %v491, 4
      %v524 = vpop.permute.xlu0 %523
      %525 = vrot.lane.b32.xlu0 %v493, 4
      %v526 = vpop.permute.xlu0 %525
      %527 = vrot.lane.b32.xlu0 %v496, 4
      %v528 = vpop.permute.xlu0 %527
      %529 = vrot.lane.b32.xlu0 %v498, 4
      %v530 = vpop.permute.xlu0 %529
      %549 = vrot.lane.b32.xlu0 %v407, 8
      %v550 = vpop.permute.xlu0 %549
      %551 = vrot.lane.b32.xlu0 %v408, 8
      %v552 = vpop.permute.xlu0 %551
      %553 = vrot.lane.b32.xlu0 %v410, 8
      %v554 = vpop.permute.xlu0 %553
      %555 = vrot.lane.b32.xlu0 %v411, 8
      %v556 = vpop.permute.xlu0 %555
      %557 = vrot.lane.b32.xlu0 %v413, 8
      %v558 = vpop.permute.xlu0 %557
      %559 = vrot.lane.b32.xlu0 %v414, 8
      %v560 = vpop.permute.xlu0 %559
      %561 = vrot.lane.b32.xlu0 %v416, 8
      %v562 = vpop.permute.xlu0 %561
      %563 = vrot.lane.b32.xlu0 %v417, 8
      %v564 = vpop.permute.xlu0 %563
      %565 = vrot.lane.b32.xlu0 %v419, 8
      %v566 = vpop.permute.xlu0 %565
      %567 = vrot.lane.b32.xlu0 %v420, 8
      %v568 = vpop.permute.xlu0 %567
      %569 = vrot.lane.b32.xlu0 %v422, 8
      %v570 = vpop.permute.xlu0 %569
      %571 = vrot.lane.b32.xlu0 %v423, 8
      %v572 = vpop.permute.xlu0 %571
      %573 = vrot.lane.b32.xlu0 %v425, 8
      %v574 = vpop.permute.xlu0 %573
      %575 = vrot.lane.b32.xlu0 %v426, 8
      %v576 = vpop.permute.xlu0 %575
      %577 = vrot.lane.b32.xlu0 %v431, 8
      %v578 = vpop.permute.xlu0 %577
      %579 = vrot.lane.b32.xlu0 %v432, 8
      %v580 = vpop.permute.xlu0 %579
      %v598 = vrot.slane %v431, 1
      %v599 = vrot.slane %v432, 1
      %v600 = vsel %vm458, %v598, %v599
      %v601 = vrot.slane %v433, 1
      %v602 = vsel %vm458, %v599, %v601
      %603 = vrot.lane.b32.xlu0 %v466, 12
      %v604 = vpop.permute.xlu0 %603
      %605 = vrot.lane.b32.xlu0 %v468, 12
      %v606 = vpop.permute.xlu0 %605
      %607 = vrot.lane.b32.xlu0 %v471, 12
      %v608 = vpop.permute.xlu0 %607
      %609 = vrot.lane.b32.xlu0 %v473, 12
      %v610 = vpop.permute.xlu0 %609
      %611 = vrot.lane.b32.xlu0 %v476, 12
      %v612 = vpop.permute.xlu0 %611
      %613 = vrot.lane.b32.xlu0 %v478, 12
      %v614 = vpop.permute.xlu0 %613
      %615 = vrot.lane.b32.xlu0 %v481, 12
      %v616 = vpop.permute.xlu0 %615
      %617 = vrot.lane.b32.xlu0 %v483, 12
      %v618 = vpop.permute.xlu0 %617
      %619 = vrot.lane.b32.xlu0 %v486, 12
      %v620 = vpop.permute.xlu0 %619
      %621 = vrot.lane.b32.xlu0 %v488, 12
      %v622 = vpop.permute.xlu0 %621
      %623 = vrot.lane.b32.xlu0 %v491, 12
      %v624 = vpop.permute.xlu0 %623
      %625 = vrot.lane.b32.xlu0 %v493, 12
      %v626 = vpop.permute.xlu0 %625
      %627 = vrot.lane.b32.xlu0 %v496, 12
      %v628 = vpop.permute.xlu0 %627
      %629 = vrot.lane.b32.xlu0 %v498, 12
      %v630 = vpop.permute.xlu0 %629
      %631 = vrot.lane.b32.xlu0 %v600, 12
      %v632 = vpop.permute.xlu0 %631
      %633 = vrot.lane.b32.xlu0 %v602, 12
      %v634 = vpop.permute.xlu0 %633
      %vm651 = vcmask 31744
      %v652 = vsel %vm651, %v404, %v500
      %v653 = vsel %vm651, %v405, %v502
      %v654 = vsel %vm651, %v407, %v504
      %v655 = vsel %vm651, %v408, %v506
      %v656 = vsel %vm651, %v410, %v508
      %v657 = vsel %vm651, %v411, %v510
      %v658 = vsel %vm651, %v413, %v512
      %v659 = vsel %vm651, %v414, %v514
      %v660 = vsel %vm651, %v416, %v516
      %v661 = vsel %vm651, %v417, %v518
      %v662 = vsel %vm651, %v419, %v520
      %v663 = vsel %vm651, %v420, %v522
      %v664 = vsel %vm651, %v422, %v524
      %v665 = vsel %vm651, %v423, %v526
      %v666 = vsel %vm651, %v425, %v528
      %v667 = vsel %vm651, %v426, %v530
      %vm668 = vcmask 64512
      %v669 = vsel %vm668, %v652, %v550
      %v670 = vsel %vm668, %v653, %v552
      %v671 = vsel %vm668, %v654, %v554
      %v672 = vsel %vm668, %v655, %v556
      %v673 = vsel %vm668, %v656, %v558
      %v674 = vsel %vm668, %v657, %v560
      %v675 = vsel %vm668, %v658, %v562
      %v676 = vsel %vm668, %v659, %v564
      %v677 = vsel %vm668, %v660, %v566
      %v678 = vsel %vm668, %v661, %v568
      %v679 = vsel %vm668, %v662, %v570
      %v680 = vsel %vm668, %v663, %v572
      %v681 = vsel %vm668, %v664, %v574
      %v682 = vsel %vm668, %v665, %v576
      %v683 = vsel %vm668, %v666, %v578
      %v684 = vsel %vm668, %v667, %v580
      %vm685 = vcmask 97280
      %v686 = vsel %vm685, %v669, %v604
      %v687 = vsel %vm685, %v670, %v606
      %v688 = vsel %vm685, %v671, %v608
      %v689 = vsel %vm685, %v672, %v610
      %v690 = vsel %vm685, %v673, %v612
      %v691 = vsel %vm685, %v674, %v614
      %v692 = vsel %vm685, %v675, %v616
      %v693 = vsel %vm685, %v676, %v618
      %v694 = vsel %vm685, %v677, %v620
      %v695 = vsel %vm685, %v678, %v622
      %v696 = vsel %vm685, %v679, %v624
      %v697 = vsel %vm685, %v680, %v626
      %v698 = vsel %vm685, %v681, %v628
      %v699 = vsel %vm685, %v682, %v630
      %v700 = vsel %vm685, %v683, %v632
      %v701 = vsel %vm685, %v684, %v634
      %v702 = vpack.c.bf16 %v687, %v686
      %v703 = vpack.c.bf16 %v689, %v688
      %v704 = vpack.c.bf16 %v691, %v690
      %v705 = vpack.c.bf16 %v693, %v692
      %v706 = vpack.c.bf16 %v695, %v694
      %v707 = vpack.c.bf16 %v697, %v696
      %v708 = vpack.c.bf16 %v699, %v698
      %v709 = vpack.c.bf16 %v701, %v700
      %v710 = vld [vmem:[%s2] sm:$0xf]
      %v711 = vld [vmem:[%s2 + $0x4] sm:$0xf]
      %v714 = vunpack.c.l.b16 %v710
      %v715 = vunpack.c.l.b16 %v711
      %v716 = vpack.c.b16 %v715, %v714
      %vm718 = vcmask 130048
      %v720 = vsel %vm718, %v702, 0
      %v723 = vsel %vm718, %v703, 0
      %v726 = vsel %vm718, %v704, 0
      %v729 = vsel %vm718, %v705, 0
      %v732 = vsel %vm718, %v706, 0
      %v735 = vsel %vm718, %v707, 0
      %v738 = vsel %vm718, %v708, 0
      %v741 = vsel %vm718, %v709, 0
      %743 = vmatprep.subr.bf16.mxu0 0
      %744 = vmatpush1.bf16.msra.mxu0 %v716
      %745 = vmatprep.subr.bf16.mxu0 0
      %746 = vmatpush1.bf16.msra.mxu0 0
      %747 = vmatprep.subr.bf16.mxu0 0
      %748 = vmatpush1.bf16.msra.mxu0 0
      %749 = vmatprep.subr.bf16.mxu0 0
      %750 = vmatpush1.bf16.msra.mxu0 0
      %751 = vmatprep.subr.bf16.mxu0 0
      %752 = vmatpush1.bf16.msra.mxu0 0
      %753 = vmatprep.subr.bf16.mxu0 0
      %754 = vmatpush1.bf16.msra.mxu0 0
      %755 = vmatprep.subr.bf16.mxu0 0
      %756 = vmatpush1.bf16.msra.mxu0 0
      %757 = vmatprep.subr.bf16.mxu0 0
      %758 = vmatpush1.bf16.msra.mxu0 0
      %759 = vmatprep.subr.bf16.mxu0 0
      %760 = vmatpush1.bf16.msra.mxu0 0
      %761 = vmatprep.subr.bf16.mxu0 0
      %762 = vmatpush1.bf16.msra.mxu0 0
      %763 = vmatprep.subr.bf16.mxu0 0
      %764 = vmatpush1.bf16.msra.mxu0 0
      %765 = vmatprep.subr.bf16.mxu0 0
      %766 = vmatpush1.bf16.msra.mxu0 0
      %767 = vmatprep.subr.bf16.mxu0 0
      %768 = vmatpush1.bf16.msra.mxu0 0
      %769 = vmatprep.subr.bf16.mxu0 0
      %770 = vmatpush1.bf16.msra.mxu0 0
      %771 = vmatprep.subr.bf16.mxu0 0
      %772 = vmatpush1.bf16.msra.mxu0 0
      %773 = vmatprep.subr.bf16.mxu0 0
      %774 = vmatpush1.bf16.msra.mxu0 0
      %775 = vmatprep.mubr.bf16.mxu0 0
      %776 = vmatmul.mubr.bf16.gmra.mrb[0].mxu0 %v720
      %v777 = vpop.f32.mrb[0].mxu0
      %v778 = vadd.f32 0.0, %v777
      %v779 = vpop.f32.mrb[0].mxu0
      %v780 = vpop.f32.mrb[0].mxu0
      %v781 = vadd.f32 0.0, %v780
      %v782 = vpop.f32.mrb[0].mxu0
      %783 = vmatprep.mubr.bf16.mxu0 0
      %784 = vmatmul.mubr.bf16.gmra.mrb[0].mxu0 %v723
      %v785 = vpop.f32.mrb[0].mxu0
      %v786 = vadd.f32 0.0, %v785
      %v787 = vpop.f32.mrb[0].mxu0
      %v788 = vpop.f32.mrb[0].mxu0
      %v789 = vadd.f32 0.0, %v788
      %v790 = vpop.f32.mrb[0].mxu0
      %791 = vmatprep.mubr.bf16.mxu0 0
      %792 = vmatmul.mubr.bf16.gmra.mrb[0].mxu0 %v726
      %v793 = vpop.f32.mrb[0].mxu0
      %v794 = vadd.f32 0.0, %v793
      %v795 = vpop.f32.mrb[0].mxu0
      %v796 = vpop.f32.mrb[0].mxu0
      %v797 = vadd.f32 0.0, %v796
      %v798 = vpop.f32.mrb[0].mxu0
      %799 = vmatprep.mubr.bf16.mxu0 0
      %800 = vmatmul.mubr.bf16.gmra.mrb[0].mxu0 %v729
      %v801 = vpop.f32.mrb[0].mxu0
      %v802 = vadd.f32 0.0, %v801
      %v803 = vpop.f32.mrb[0].mxu0
      %v804 = vpop.f32.mrb[0].mxu0
      %v805 = vadd.f32 0.0, %v804
      %v806 = vpop.f32.mrb[0].mxu0
      %807 = vmatprep.mubr.bf16.mxu0 0
      %808 = vmatmul.mubr.bf16.gmra.mrb[0].mxu0 %v732
      %v809 = vpop.f32.mrb[0].mxu0
      %v810 = vadd.f32 0.0, %v809
      %v811 = vpop.f32.mrb[0].mxu0
      %v812 = vpop.f32.mrb[0].mxu0
      %v813 = vadd.f32 0.0, %v812
      %v814 = vpop.f32.mrb[0].mxu0
      %815 = vmatprep.mubr.bf16.mxu0 0
      %816 = vmatmul.mubr.bf16.gmra.mrb[0].mxu0 %v735
      %v817 = vpop.f32.mrb[0].mxu0
      %v818 = vadd.f32 0.0, %v817
      %v819 = vpop.f32.mrb[0].mxu0
      %v820 = vpop.f32.mrb[0].mxu0
      %v821 = vadd.f32 0.0, %v820
      %v822 = vpop.f32.mrb[0].mxu0
      %823 = vmatprep.mubr.bf16.mxu0 0
      %824 = vmatmul.mubr.bf16.gmra.mrb[0].mxu0 %v738
      %v825 = vpop.f32.mrb[0].mxu0
      %v826 = vadd.f32 0.0, %v825
      %v827 = vpop.f32.mrb[0].mxu0
      %v828 = vpop.f32.mrb[0].mxu0
      %v829 = vadd.f32 0.0, %v828
      %v830 = vpop.f32.mrb[0].mxu0
      %831 = vmatprep.mubr.bf16.mxu0 0
      %832 = vmatmul.mubr.bf16.gmra.mrb[0].mxu0 %v741
      %v833 = vpop.f32.mrb[0].mxu0
      %v834 = vadd.f32 0.0, %v833
      %v835 = vpop.f32.mrb[0].mxu0
      %v836 = vpop.f32.mrb[0].mxu0
      %v837 = vadd.f32 0.0, %v836
      %v838 = vpop.f32.mrb[0].mxu0
      %839 = vdwg.mxu0
      %v840 = vsel %vm718, %v686, 0.0
      %v841 = vsel %vm718, %v687, 0.0
      %v842 = vadd.f32 %v840, %v841
      %v843 = vsel %vm718, %v688, 0.0
      %v844 = vadd.f32 %v842, %v843
      %v845 = vsel %vm718, %v689, 0.0
      %v846 = vadd.f32 %v844, %v845
      %v847 = vsel %vm718, %v690, 0.0
      %v848 = vadd.f32 %v846, %v847
      %v849 = vsel %vm718, %v691, 0.0
      %v850 = vadd.f32 %v848, %v849
      %v851 = vsel %vm718, %v692, 0.0
      %v852 = vadd.f32 %v850, %v851
      %v853 = vsel %vm718, %v693, 0.0
      %v854 = vadd.f32 %v852, %v853
      %v855 = vsel %vm718, %v694, 0.0
      %v856 = vadd.f32 %v854, %v855
      %v857 = vsel %vm718, %v695, 0.0
      %v858 = vadd.f32 %v856, %v857
      %v859 = vsel %vm718, %v696, 0.0
      %v860 = vadd.f32 %v858, %v859
      %v861 = vsel %vm718, %v697, 0.0
      %v862 = vadd.f32 %v860, %v861
      %v863 = vsel %vm718, %v698, 0.0
      %v864 = vadd.f32 %v862, %v863
      %v865 = vsel %vm718, %v699, 0.0
      %v866 = vadd.f32 %v864, %v865
      %v867 = vsel %vm718, %v700, 0.0
      %v868 = vadd.f32 %v866, %v867
      %v869 = vsel %vm718, %v701, 0.0
      %v870 = vadd.f32 %v868, %v869
      %v871 = vrot.slane %v870, 4
      %v872 = vadd.f32 %v870, %v871
      %v873 = vrot.slane %v872, 2
      %v874 = vadd.f32 %v872, %v873
      %v875 = vrot.slane %v874, 1
      %v876 = vadd.f32 %v874, %v875
      %v877 = vunpack.c.l.bf16 %v710
      %v878 = vunpack.c.l.bf16 %v711
      %v880 = vsel %vm718, %v876, 0
      %882 = vmatprep.subr.mxu0 0.0
      %883 = vmatpush1.msra.mxu0 %v877
      %884 = vmatprep.subr.mxu0 0.0
      %885 = vmatpush1.msra.mxu0 %v878
      %886 = vmatprep.subr.mxu0 0.0
      %887 = vmatpush1.msra.mxu0 0.0
      %888 = vmatprep.subr.mxu0 0.0
      %889 = vmatpush1.msra.mxu0 0.0
      %890 = vmatprep.subr.mxu0 0.0
      %891 = vmatpush1.msra.mxu0 0.0
      %892 = vmatprep.subr.mxu0 0.0
      %893 = vmatpush1.msra.mxu0 0.0
      %894 = vmatprep.subr.mxu0 0.0
      %895 = vmatpush1.msra.mxu0 0.0
      %896 = vmatprep.subr.mxu0 0.0
      %897 = vmatpush1.msra.mxu0 0.0
      %898 = vmatprep.subr.mxu0 0.0
      %899 = vmatpush1.msra.mxu0 0.0
      %900 = vmatprep.subr.mxu0 0.0
      %901 = vmatpush1.msra.mxu0 0.0
      %902 = vmatprep.subr.mxu0 0.0
      %903 = vmatpush1.msra.mxu0 0.0
      %904 = vmatprep.subr.mxu0 0.0
      %905 = vmatpush1.msra.mxu0 0.0
      %906 = vmatprep.subr.mxu0 0.0
      %907 = vmatpush1.msra.mxu0 0.0
      %908 = vmatprep.subr.mxu0 0.0
      %909 = vmatpush1.msra.mxu0 0.0
      %910 = vmatprep.subr.mxu0 0.0
      %911 = vmatpush1.msra.mxu0 0.0
      %912 = vmatprep.subr.mxu0 0.0
      %913 = vmatpush1.msra.mxu0 0.0
      %914 = vmatprep.subr.mxu0 0.0
      %915 = vmatpush1.msra.mxu0 0.0
      %916 = vmatprep.subr.mxu0 0.0
      %917 = vmatpush1.msra.mxu0 0.0
      %918 = vmatprep.subr.mxu0 0.0
      %919 = vmatpush1.msra.mxu0 0.0
      %920 = vmatprep.subr.mxu0 0.0
      %921 = vmatpush1.msra.mxu0 0.0
      %922 = vmatprep.subr.mxu0 0.0
      %923 = vmatpush1.msra.mxu0 0.0
      %924 = vmatprep.subr.mxu0 0.0
      %925 = vmatpush1.msra.mxu0 0.0
      %926 = vmatprep.subr.mxu0 0.0
      %927 = vmatpush1.msra.mxu0 0.0
      %928 = vmatprep.subr.mxu0 0.0
      %929 = vmatpush1.msra.mxu0 0.0
      %930 = vmatprep.subr.mxu0 0.0
      %931 = vmatpush1.msra.mxu0 0.0
      %932 = vmatprep.subr.mxu0 0.0
      %933 = vmatpush1.msra.mxu0 0.0
      %934 = vmatprep.subr.mxu0 0.0
      %935 = vmatpush1.msra.mxu0 0.0
      %936 = vmatprep.subr.mxu0 0.0
      %937 = vmatpush1.msra.mxu0 0.0
      %938 = vmatprep.subr.mxu0 0.0
      %939 = vmatpush1.msra.mxu0 0.0
      %940 = vmatprep.subr.mxu0 0.0
      %941 = vmatpush1.msra.mxu0 0.0
      %942 = vmatprep.subr.mxu0 0.0
      %943 = vmatpush1.msra.mxu0 0.0
      %944 = vmatprep.subr.mxu0 0.0
      %945 = vmatpush1.msra.mxu0 0.0
      %946 = vmatprep.mubr.f32.mxu0 0.0
      %947 = vmatmul.mubr.f32.gmra.mrb[0].mxu0 %v880
      %v948 = vpop.f32.mrb[0].mxu0
      %v949 = vadd.f32 0.0, %v948
      %v950 = vpop.f32.mrb[0].mxu0
      %951 = vdwg.mxu0
      %vm952 = vcmask 253952
      %953 = vst.msk [vmem:[%s371] sm:$0x1] %vm952, %v949
      %v954 = vmul.f32 %v778, %v778
      %v955 = vmul.f32 %v781, %v781
      %v956 = vmul.f32 %v786, %v786
      %v957 = vmul.f32 %v789, %v789
      %v958 = vmul.f32 %v794, %v794
      %v959 = vmul.f32 %v797, %v797
      %v960 = vmul.f32 %v802, %v802
      %v961 = vmul.f32 %v805, %v805
      %v962 = vmul.f32 %v810, %v810
      %v963 = vmul.f32 %v813, %v813
      %v964 = vmul.f32 %v818, %v818
      %v965 = vmul.f32 %v821, %v821
      %v966 = vmul.f32 %v826, %v826
      %v967 = vmul.f32 %v829, %v829
      %v968 = vmul.f32 %v834, %v834
      %v969 = vmul.f32 %v837, %v837
      %vm970 = vcmask 261120
      %v971 = vsel %vm970, %v954, 0.0
      %v972 = vsel %vm970, %v955, 0.0
      %v973 = vadd.f32 %v971, %v972
      %v974 = vsel %vm970, %v956, 0.0
      %v975 = vadd.f32 %v973, %v974
      %v976 = vsel %vm970, %v957, 0.0
      %v977 = vadd.f32 %v975, %v976
      %v978 = vsel %vm970, %v958, 0.0
      %v979 = vadd.f32 %v977, %v978
      %v980 = vsel %vm970, %v959, 0.0
      %v981 = vadd.f32 %v979, %v980
      %v982 = vsel %vm970, %v960, 0.0
      %v983 = vadd.f32 %v981, %v982
      %v984 = vsel %vm970, %v961, 0.0
      %v985 = vadd.f32 %v983, %v984
      %v986 = vsel %vm970, %v962, 0.0
      %v987 = vadd.f32 %v985, %v986
      %v988 = vsel %vm970, %v963, 0.0
      %v989 = vadd.f32 %v987, %v988
      %v990 = vsel %vm970, %v964, 0.0
      %v991 = vadd.f32 %v989, %v990
      %v992 = vsel %vm970, %v965, 0.0
      %v993 = vadd.f32 %v991, %v992
      %v994 = vsel %vm970, %v966, 0.0
      %v995 = vadd.f32 %v993, %v994
      %v996 = vsel %vm970, %v967, 0.0
      %v997 = vadd.f32 %v995, %v996
      %v998 = vsel %vm970, %v968, 0.0
      %v999 = vadd.f32 %v997, %v998
      %v1000 = vsel %vm970, %v969, 0.0
      %v1001 = vadd.f32 %v999, %v1000
      %v1002 = vrot.slane %v1001, 4
      %v1003 = vadd.f32 %v1001, %v1002
      %v1004 = vrot.slane %v1003, 2
      %v1005 = vadd.f32 %v1003, %v1004
      %v1006 = vrot.slane %v1005, 1
      %v1007 = vadd.f32 %v1005, %v1006
      %1008 = vst.msk [vmem:[%s378] sm:$0x1] %vm952, %v1007
      %v1009 = vpack.c.bf16 %v781, %v778
      %v1010 = vpack.c.bf16 %v789, %v786
      %v1011 = vpack.c.bf16 %v797, %v794
      %v1012 = vpack.c.bf16 %v805, %v802
      %v1013 = vpack.c.bf16 %v813, %v810
      %v1014 = vpack.c.bf16 %v821, %v818
      %v1015 = vpack.c.bf16 %v829, %v826
      %v1016 = vpack.c.bf16 %v837, %v834
      %v1025 = vunpack.c.l.b16 %v1009
      %v1026 = vunpack.c.h.b16 %v1009
      %v1027 = vunpack.c.l.b16 %v1010
      %v1028 = vunpack.c.h.b16 %v1010
      %v1029 = vunpack.c.l.b16 %v1011
      %v1030 = vunpack.c.h.b16 %v1011
      %v1031 = vunpack.c.l.b16 %v1012
      %v1032 = vunpack.c.h.b16 %v1012
      %v1033 = vunpack.c.l.b16 %v1013
      %v1034 = vunpack.c.h.b16 %v1013
      %v1035 = vunpack.c.l.b16 %v1014
      %v1036 = vunpack.c.h.b16 %v1014
      %v1037 = vunpack.c.l.b16 %v1015
      %v1038 = vunpack.c.h.b16 %v1015
      %v1039 = vunpack.c.l.b16 %v1016
      %v1040 = vunpack.c.h.b16 %v1016
      %v1041 = vpack.c.b16 %v1025, %v1025
      %v1042 = vpack.c.b16 %v1026, %v1026
      %v1043 = vpack.c.b16 %v1027, %v1027
      %v1044 = vpack.c.b16 %v1028, %v1028
      %v1045 = vpack.c.b16 %v1029, %v1029
      %v1046 = vpack.c.b16 %v1030, %v1030
      %v1047 = vpack.c.b16 %v1031, %v1031
      %v1048 = vpack.c.b16 %v1032, %v1032
      %v1049 = vpack.c.b16 %v1033, %v1033
      %v1050 = vpack.c.b16 %v1034, %v1034
      %v1051 = vpack.c.b16 %v1035, %v1035
      %v1052 = vpack.c.b16 %v1036, %v1036
      %v1053 = vpack.c.b16 %v1037, %v1037
      %v1054 = vpack.c.b16 %v1038, %v1038
      %v1055 = vpack.c.b16 %v1039, %v1039
      %v1056 = vpack.c.b16 %v1040, %v1040
      %vm1073 = vcmask 257024
      %1074 = vst.msk [vmem:[%s363] sm:$0xf] %vm1073, %v1041
      %1075 = vst.msk [vmem:[%s363 + $0x4] sm:$0xf] %vm1073, %v1042
      %1076 = vst.msk [vmem:[%s363 + $0x8] sm:$0xf] %vm1073, %v1043
      %1077 = vst.msk [vmem:[%s363 + $0xc] sm:$0xf] %vm1073, %v1044
      %1078 = vst.msk [vmem:[%s363 + $0x10] sm:$0xf] %vm1073, %v1045
      %1079 = vst.msk [vmem:[%s363 + $0x14] sm:$0xf] %vm1073, %v1046
      %1080 = vst.msk [vmem:[%s363 + $0x18] sm:$0xf] %vm1073, %v1047
      %1081 = vst.msk [vmem:[%s363 + $0x1c] sm:$0xf] %vm1073, %v1048
      %1082 = vst.msk [vmem:[%s363 + $0x20] sm:$0xf] %vm1073, %v1049
      %1083 = vst.msk [vmem:[%s363 + $0x24] sm:$0xf] %vm1073, %v1050
      %1084 = vst.msk [vmem:[%s363 + $0x28] sm:$0xf] %vm1073, %v1051
      %1085 = vst.msk [vmem:[%s363 + $0x2c] sm:$0xf] %vm1073, %v1052
      %1086 = vst.msk [vmem:[%s363 + $0x30] sm:$0xf] %vm1073, %v1053
      %1087 = vst.msk [vmem:[%s363 + $0x34] sm:$0xf] %vm1073, %v1054
      %1088 = vst.msk [vmem:[%s363 + $0x38] sm:$0xf] %vm1073, %v1055
      %1089 = vst.msk [vmem:[%s363 + $0x3c] sm:$0xf] %vm1073, %v1056
      %s1090 = smul.u32 8, %s22
      %p1091 = scmp.lt.s32.totalorder %s21, 1
      %s1092 = scalar_select %p1091, %s21, 1
      %p1093 = scmp.lt.s32.totalorder %s1090, 15
      %s1094 = scalar_select %p1093, %s1090, 15
      %s1095 = smul.addr %s1094, 2
      %s1096 = smul.addr %s1092, 32
      %s1097 = sadd.s32 %s1095, %s1096
      %s1098 = smul.addr %s1097, 4
      %s1099 = scalar_lea.vmem %s3, %s1098
      %p1100 = scmp.lt.s32.totalorder %s21, 1
      %s1101 = scalar_select %p1100, %s21, 1
      %p1102 = scmp.lt.s32.totalorder %s22, 1
      %s1103 = scalar_select %p1102, %s22, 1
      %s1104 = smul.addr %s1101, 2
      %s1105 = sadd.s32 %s1103, %s1104
      %s1106 = scalar_lea.vmem %s4, %s1105
      %p1107 = scmp.lt.s32.totalorder %s21, 1
      %s1108 = scalar_select %p1107, %s21, 1
      %p1109 = scmp.lt.s32.totalorder %s22, 1
      %s1110 = scalar_select %p1109, %s22, 1
      %s1111 = smul.addr %s1108, 2
      %s1112 = sadd.s32 %s1110, %s1111
      %s1113 = scalar_lea.vmem %s5, %s1112
      // Predicated region
      $region33: #{deconv2d_forward.2} parent=31 // pred_check
        %p1114 = pneg %p130
      $region34: #{deconv2d_forward.2} parent=31 // pred_check_branch
        %1116 = sbr.rel (%p1114) target = $region36
      $region35: #{deconv2d_forward.2} parent=31 // pred_region
        %s1117 = smul.u32 8, %s22
      $region36: #{deconv2d_forward.2} parent=31 // pred_fallthru
        _
      // Predicated region
      $region37: #{deconv2d_forward.2} parent=31 // pred_check
        %p1118 = pneg %p158
      $region38: #{deconv2d_forward.2} parent=31 // pred_check_branch
        %1120 = sbr.rel (%p1118) target = $region40
      $region39: #{deconv2d_forward.2} parent=31 // pred_region
        _
      $region40: #{deconv2d_forward.2} parent=31 // pred_fallthru
        _
      // Predicated region
      $region41: #{deconv2d_forward.2} parent=31 // pred_check
        %p1121 = pneg %p186
      $region42: #{deconv2d_forward.2} parent=31 // pred_check_branch
        %1123 = sbr.rel (%p1121) target = $region44
      $region43: #{deconv2d_forward.2} parent=31 // pred_region
        _
      $region44: #{deconv2d_forward.2} parent=31 // pred_fallthru
        _
    $region32: #{deconv2d_forward.2} parent=5 // pred_fallthru
      _
    %p1124 = scmp.le.s32.totalorder 2, %s12
    // Predicated region
    $region45: #{deconv2d_forward.2} parent=5 // pred_check
      %p1125 = pneg %p1124
    $region46: #{deconv2d_forward.2} parent=5 // pred_check_branch
      %1127 = sbr.rel (%p1125) target = $region48
    $region47: #{deconv2d_forward.2} parent=5 // pred_region
      %s1128 = ssub.s32 %s12, 2
      // Predicated region
      $region49: #{deconv2d_forward.2} parent=47 // pred_check
        %p1129 = pneg %p136
      $region50: #{deconv2d_forward.2} parent=47 // pred_check_branch
        %1131 = sbr.rel (%p1129) target = $region52
      $region51: #{deconv2d_forward.2} parent=47 // pred_region
        %s1132 = smul.u32 8, %s24
        %p1133 = scmp.lt.s32.totalorder %s23, 1
        %s1134 = scalar_select %p1133, %s23, 1
        %p1135 = scmp.lt.s32.totalorder %s1132, 15
        %s1136 = scalar_select %p1135, %s1132, 15
        %s1137 = smul.addr %s1136, 2
        %s1138 = smul.addr %s1134, 32
        %s1139 = sadd.s32 %s1137, %s1138
        %s1140 = smul.addr %s1139, 4
        %s1141 = scalar_lea.vmem %s3, %s1140
      $region52: #{deconv2d_forward.2} parent=47 // pred_fallthru
        _
      // Predicated region
      $region53: #{deconv2d_forward.2} parent=47 // pred_check
        %p1142 = pneg %p164
      $region54: #{deconv2d_forward.2} parent=47 // pred_check_branch
        %1144 = sbr.rel (%p1142) target = $region56
      $region55: #{deconv2d_forward.2} parent=47 // pred_region
        %p1145 = scmp.lt.s32.totalorder %s23, 1
        %s1146 = scalar_select %p1145, %s23, 1
        %p1147 = scmp.lt.s32.totalorder %s24, 1
        %s1148 = scalar_select %p1147, %s24, 1
        %s1149 = smul.addr %s1146, 2
        %s1150 = sadd.s32 %s1148, %s1149
        %s1151 = scalar_lea.vmem %s4, %s1150
      $region56: #{deconv2d_forward.2} parent=47 // pred_fallthru
        _
      // Predicated region
      $region57: #{deconv2d_forward.2} parent=47 // pred_check
        %p1152 = pneg %p192
      $region58: #{deconv2d_forward.2} parent=47 // pred_check_branch
        %1154 = sbr.rel (%p1152) target = $region60
      $region59: #{deconv2d_forward.2} parent=47 // pred_region
        %p1155 = scmp.lt.s32.totalorder %s23, 1
        %s1156 = scalar_select %p1155, %s23, 1
        %p1157 = scmp.lt.s32.totalorder %s24, 1
        %s1158 = scalar_select %p1157, %s24, 1
        %s1159 = smul.addr %s1156, 2
        %s1160 = sadd.s32 %s1158, %s1159
        %s1161 = scalar_lea.vmem %s5, %s1160
      $region60: #{deconv2d_forward.2} parent=47 // pred_fallthru
        _
    $region48: #{deconv2d_forward.2} parent=5 // pred_fallthru
      _
  $region6: #{deconv2d_forward.2} parent=0 // loop_footer
    %s16 = sadd.s32 1, %s12
  $region7: #{deconv2d_forward.2} parent=0 // loop_footer_branch
    %11 = sbr.rel target = $region3
  $region8: #{deconv2d_forward.2} parent=0 // loop_exit
    _

</llo_original>
